<compile_context>
chip_gen: v6e
topology: v6e:2x2x1
jax: 0.10.0
libtpu: 0.0.40
codegen_flags: <defaults>
</compile_context>

<pallas_src>
import functools

import jax
import jax.numpy as jnp
from jax.experimental import pallas as pl
from jax.experimental.pallas import tpu as pltpu


def deep_lstm_kernel(tok_ref, emb_proj_ref, w_hh_ref, w_out_ref, b_out_ref,
                     out_ref, xp_sc, *, seq_len, batch):
    """Fused-gate LSTM recurrence + Linear/Sigmoid head, single invocation.

    tok_ref      : SMEM (B, T) int32 token ids
    emb_proj_ref : VMEM (VOCAB, 4*Hp) f32   emb @ W_ih_cat + bias, gate order (i,f,o,g)
    w_hh_ref     : VMEM (Hp, 4*Hp)   bf16   fused recurrent weights (padded)
    w_out_ref    : VMEM (Hp, NCp)    f32    output head (rows >= H and cols >= NC zero)
    b_out_ref    : VMEM (1,  NCp)    f32
    out_ref      : VMEM (Bp, NCp)    f32
    xp_sc        : VMEM (T, Bp, 4*Hp) f32   time-major precomputed gate inputs
    """
    T, B = seq_len, batch
    Bp = out_ref.shape[0]
    Hp = w_hh_ref.shape[0]

    # Deterministic padded-batch rows (they are row-isolated and discarded).
    xp_sc[...] = jnp.zeros_like(xp_sc)

    # ---- In-kernel embedding gather (off the serial critical path). --------
    # Input projection + bias are already folded into emb_proj at pack time.
    for b in range(B):
        for t in range(T):
            tok = tok_ref[b, t]
            xp_sc[t, pl.ds(b, 1), :] = emb_proj_ref[pl.ds(tok, 1), :]

    # ---- Recurrence: only h @ W_hh_cat is serially dependent. --------------
    def step(t, carry):
        h, c = carry
        gates = xp_sc[t] + jnp.dot(h.astype(jnp.bfloat16), w_hh_ref[...],
                                   preferred_element_type=jnp.float32)  # (Bp, 4Hp)
        sig = jax.nn.sigmoid(gates[:, : 3 * Hp])          # (i, f, o) in one slab
        i_g = sig[:, 0 * Hp:1 * Hp]
        f_g = sig[:, 1 * Hp:2 * Hp]
        o_g = sig[:, 2 * Hp:3 * Hp]
        g_g = jnp.tanh(gates[:, 3 * Hp:])
        c_new = f_g * c + i_g * g_g
        h_new = o_g * jnp.tanh(c_new)
        return (h_new, c_new)

    h0 = jnp.zeros((Bp, Hp), jnp.float32)
    c0 = jnp.zeros((Bp, Hp), jnp.float32)
    h_last, _ = jax.lax.fori_loop(0, T, step, (h0, c0), unroll=True)

    # ---- Head: Linear + Sigmoid on the last hidden state (lane-dense). -----
    logits = jnp.dot(h_last, w_out_ref[...],
                     preferred_element_type=jnp.float32) + b_out_ref[...]
    out_ref[...] = jax.nn.sigmoid(logits).astype(out_ref.dtype)


GATE_ORDER = (0, 1, 3, 2)   # PyTorch (i, f, g, o) -> packed (i, f, o, g)


def pack_params(emb_table, w_ih, w_hh, b_ih, b_hh, w_out, b_out, *, h_pad, nc_pad):
    """PyTorch-style per-gate weights -> fused, padded, pre-projected layout.

    Returns:
      emb_proj  (VOCAB, 4*Hp) f32 : emb_table @ W_ih_cat + (b_ih+b_hh), gate order (i,f,o,g)
      w_hh_bf16 (Hp, 4*Hp)   bf16 : fused recurrent weights (cast once here)
      w_out_pad (Hp, NCp)    f32
      b_out_pad (1, NCp)     f32
    Padded rows/columns are zero so padded lanes of h/c stay exactly zero.
    """
    H = w_hh.shape[-1]
    pad = h_pad - H
    b = b_ih + b_hh
    w_ih_cat = jnp.concatenate(
        [jnp.pad(w_ih[g], ((0, 0), (0, pad))) for g in GATE_ORDER], axis=-1)    # (E, 4Hp)
    w_hh_cat = jnp.concatenate(
        [jnp.pad(w_hh[g], ((0, pad), (0, pad))) for g in GATE_ORDER], axis=-1)  # (Hp, 4Hp)
    b_cat = jnp.concatenate(
        [jnp.pad(b[g], (0, pad)) for g in GATE_ORDER])[None, :]                 # (1, 4Hp)

    emb_proj = emb_table.astype(jnp.float32) @ w_ih_cat + b_cat                 # (VOCAB, 4Hp)
    w_hh_bf16 = w_hh_cat.astype(jnp.bfloat16)
    w_out_pad = jnp.pad(w_out, ((0, pad), (0, nc_pad - w_out.shape[1])))
    b_out_pad = jnp.pad(b_out, ((0, 0), (0, nc_pad - b_out.shape[1])))
    return emb_proj, w_hh_bf16, w_out_pad, b_out_pad


def deep_lstm_forward(tokens, emb_proj, w_hh_bf16, w_out_pad, b_out_pad,
                      *, num_classes, batch_pad=8):
    """tokens: int32 (B, T).  Returns sigmoid output (B, num_classes)."""
    B, T = tokens.shape
    assert B <= batch_pad
    hp4 = emb_proj.shape[1]
    NCp = w_out_pad.shape[1]

    kernel = functools.partial(deep_lstm_kernel, seq_len=T, batch=B)
    out_pad = pl.pallas_call(
        kernel,
        out_shape=jax.ShapeDtypeStruct((batch_pad, NCp), jnp.float32),
        # Gridless: the whole (tiny) problem is VMEM/SMEM resident for the call.
        in_specs=[
            pl.BlockSpec(memory_space=pltpu.MemorySpace.SMEM),    # tokens
            pl.BlockSpec(memory_space=pltpu.MemorySpace.VMEM),    # emb_proj
            pl.BlockSpec(memory_space=pltpu.MemorySpace.VMEM),    # W_hh (bf16)
            pl.BlockSpec(memory_space=pltpu.MemorySpace.VMEM),    # W_out
            pl.BlockSpec(memory_space=pltpu.MemorySpace.VMEM),    # b_out
        ],
        out_specs=pl.BlockSpec(memory_space=pltpu.MemorySpace.VMEM),
        scratch_shapes=[
            pltpu.VMEM((T, batch_pad, hp4), jnp.float32),         # X_proj (time-major)
        ],
    )(tokens, emb_proj, w_hh_bf16, w_out_pad, b_out_pad)
    return out_pad[:B, :num_classes]


def deep_lstm_reference(tokens, emb_table, w_ih, w_hh, b_ih, b_hh, w_out, b_out):
    """Pure-JAX f32 reference matching torch.nn.LSTM(batch_first=True) semantics."""
    emb = emb_table[tokens].astype(jnp.float32)                   # (B, T, E)
    B = emb.shape[0]
    H = w_hh.shape[-1]
    b = b_ih + b_hh

    def step(carry, x_t):
        h, c = carry
        pre = [x_t @ w_ih[g] + h @ w_hh[g] + b[g] for g in range(4)]
        i = jax.nn.sigmoid(pre[0])
        f = jax.nn.sigmoid(pre[1])
        gg = jnp.tanh(pre[2])
        o = jax.nn.sigmoid(pre[3])
        c = f * c + i * gg
        h = o * jnp.tanh(c)
        return (h, c), None

    h0 = jnp.zeros((B, H), jnp.float32)
    c0 = jnp.zeros((B, H), jnp.float32)
    (h_last, _), _ = jax.lax.scan(step, (h0, c0), jnp.transpose(emb, (1, 0, 2)))
    return jax.nn.sigmoid(h_last @ w_out + b_out)


if __name__ == "__main__":
    # Shapes consistent with the module: vocab_size=50, embedding_vector_length=32,
    # max_sentence_length=8, hidden_size=100 (hard-coded), num_classes=1.
    VOCAB, E, T, B, H, NC = 50, 32, 8, 2, 100, 1
    HP, NCP, BP = 128, 128, 8   # hidden / classes lane-padded, batch sublane-padded

    key = jax.random.PRNGKey(0)
    k_tok, k_emb, k_wih, k_whh, k_bih, k_bhh, k_wo, k_bo = jax.random.split(key, 8)

    tokens = jax.random.randint(k_tok, (B, T), 0, VOCAB, dtype=jnp.int32)

    # PyTorch-style uniform(-1/sqrt(H), 1/sqrt(H)) init; gate order (i, f, g, o).
    scale = 1.0 / jnp.sqrt(jnp.float32(H))
    emb_table = jax.random.normal(k_emb, (VOCAB, E), jnp.float32)
    w_ih = jax.random.uniform(k_wih, (4, E, H), jnp.float32, -scale, scale)
    w_hh = jax.random.uniform(k_whh, (4, H, H), jnp.float32, -scale, scale)
    b_ih = jax.random.uniform(k_bih, (4, H), jnp.float32, -scale, scale)
    b_hh = jax.random.uniform(k_bhh, (4, H), jnp.float32, -scale, scale)
    w_out = jax.random.uniform(k_wo, (H, NC), jnp.float32, -scale, scale)
    b_out = jax.random.uniform(k_bo, (1, NC), jnp.float32, -scale, scale)

    # One-time packing: fused + padded weights, embedding/input-proj folded.
    emb_proj, w_hh_bf16, w_out_pad, b_out_pad = pack_params(
        emb_table, w_ih, w_hh, b_ih, b_hh, w_out, b_out, h_pad=HP, nc_pad=NCP)

    out = deep_lstm_forward(tokens, emb_proj, w_hh_bf16, w_out_pad, b_out_pad,
                            num_classes=NC, batch_pad=BP)
    out = jax.block_until_ready(out)

    ref = deep_lstm_reference(tokens, emb_table, w_ih, w_hh, b_ih, b_hh,
                              w_out, b_out)
    assert out.shape == (B, NC)
    # bf16 operands on the recurrent matmul (f32 accumulation) -> relaxed tolerance.
    assert jnp.allclose(out, ref, atol=3e-3, rtol=3e-3), (out, ref)

    print("KERNEL_OK")
</pallas_src>

<mosaic_0001>
module attributes {stable_mosaic.version = 11 : i64} {
  func.func @deep_lstm_kernel(%arg0: memref<2x8xi32, #tpu.memory_space<smem>>, %arg1: memref<50x512xf32, #tpu.memory_space<vmem>>, %arg2: memref<128x512xbf16, #tpu.memory_space<vmem>>, %arg3: memref<128x128xf32, #tpu.memory_space<vmem>>, %arg4: memref<1x128xf32, #tpu.memory_space<vmem>>, %arg5: memref<8x128xf32, #tpu.memory_space<vmem>>, %arg6: memref<8x8x512xf32, #tpu.memory_space<vmem>>) attributes {dimension_semantics = [], scalar_prefetch = 0 : i64, scratch_operands = 1 : i64, tpu.core_type = #tpu.core_type<tc>} {
    %cst = arith.constant 0.000000e+00 : f32
    %0 = vector.broadcast %cst : f32 to vector<8x8x512xf32>
    %c0 = arith.constant 0 : index
    %c0_0 = arith.constant 0 : index
    %c0_1 = arith.constant 0 : index
    %1 = vector.load %arg6[%c0, %c0_0, %c0_1] : memref<8x8x512xf32, #tpu.memory_space<vmem>>, vector<8x8x512xf32>
    tpu.vector_store %arg6[%c0, %c0_0, %c0_1], %0 {strides = array<i32>} : memref<8x8x512xf32, #tpu.memory_space<vmem>>, vector<8x8x512xf32>,
    %c0_2 = arith.constant 0 : index
    %c0_3 = arith.constant 0 : index
    %2 = memref.load %arg0[%c0_2, %c0_3] : memref<2x8xi32, #tpu.memory_space<smem>>
    %3 = arith.index_cast %2 : i32 to index
    %c0_4 = arith.constant 0 : index
    %4 = vector.load %arg1[%3, %c0_4] : memref<50x512xf32, #tpu.memory_space<vmem>>, vector<1x512xf32>
    %c0_5 = arith.constant 0 : index
    %c0_6 = arith.constant 0 : index
    %c0_7 = arith.constant 0 : index
    %5 = vector.load %arg6[%c0_5, %c0_6, %c0_7] : memref<8x8x512xf32, #tpu.memory_space<vmem>>, vector<1x1x512xf32>
    %6 = vector.shape_cast %5 : vector<1x1x512xf32> to vector<1x512xf32>
    %7 = vector.shape_cast %4 : vector<1x512xf32> to vector<1x1x512xf32>
    tpu.vector_store %arg6[%c0_5, %c0_6, %c0_7], %7 {strides = array<i32>} : memref<8x8x512xf32, #tpu.memory_space<vmem>>, vector<1x1x512xf32>,
    %c0_8 = arith.constant 0 : index
    %c1 = arith.constant 1 : index
    %8 = memref.load %arg0[%c0_8, %c1] : memref<2x8xi32, #tpu.memory_space<smem>>
    %9 = arith.index_cast %8 : i32 to index
    %c0_9 = arith.constant 0 : index
    %10 = vector.load %arg1[%9, %c0_9] : memref<50x512xf32, #tpu.memory_space<vmem>>, vector<1x512xf32>
    %c1_10 = arith.constant 1 : index
    %c0_11 = arith.constant 0 : index
    %c0_12 = arith.constant 0 : index
    %11 = vector.load %arg6[%c1_10, %c0_11, %c0_12] : memref<8x8x512xf32, #tpu.memory_space<vmem>>, vector<1x1x512xf32>
    %12 = vector.shape_cast %11 : vector<1x1x512xf32> to vector<1x512xf32>
    %13 = vector.shape_cast %10 : vector<1x512xf32> to vector<1x1x512xf32>
    tpu.vector_store %arg6[%c1_10, %c0_11, %c0_12], %13 {strides = array<i32>} : memref<8x8x512xf32, #tpu.memory_space<vmem>>, vector<1x1x512xf32>,
    %c0_13 = arith.constant 0 : index
    %c2 = arith.constant 2 : index
    %14 = memref.load %arg0[%c0_13, %c2] : memref<2x8xi32, #tpu.memory_space<smem>>
    %15 = arith.index_cast %14 : i32 to index
    %c0_14 = arith.constant 0 : index
    %16 = vector.load %arg1[%15, %c0_14] : memref<50x512xf32, #tpu.memory_space<vmem>>, vector<1x512xf32>
    %c2_15 = arith.constant 2 : index
    %c0_16 = arith.constant 0 : index
    %c0_17 = arith.constant 0 : index
    %17 = vector.load %arg6[%c2_15, %c0_16, %c0_17] : memref<8x8x512xf32, #tpu.memory_space<vmem>>, vector<1x1x512xf32>
    %18 = vector.shape_cast %17 : vector<1x1x512xf32> to vector<1x512xf32>
    %19 = vector.shape_cast %16 : vector<1x512xf32> to vector<1x1x512xf32>
    tpu.vector_store %arg6[%c2_15, %c0_16, %c0_17], %19 {strides = array<i32>} : memref<8x8x512xf32, #tpu.memory_space<vmem>>, vector<1x1x512xf32>,
    %c0_18 = arith.constant 0 : index
    %c3 = arith.constant 3 : index
    %20 = memref.load %arg0[%c0_18, %c3] : memref<2x8xi32, #tpu.memory_space<smem>>
    %21 = arith.index_cast %20 : i32 to index
    %c0_19 = arith.constant 0 : index
    %22 = vector.load %arg1[%21, %c0_19] : memref<50x512xf32, #tpu.memory_space<vmem>>, vector<1x512xf32>
    %c3_20 = arith.constant 3 : index
    %c0_21 = arith.constant 0 : index
    %c0_22 = arith.constant 0 : index
    %23 = vector.load %arg6[%c3_20, %c0_21, %c0_22] : memref<8x8x512xf32, #tpu.memory_space<vmem>>, vector<1x1x512xf32>
    %24 = vector.shape_cast %23 : vector<1x1x512xf32> to vector<1x512xf32>
    %25 = vector.shape_cast %22 : vector<1x512xf32> to vector<1x1x512xf32>
    tpu.vector_store %arg6[%c3_20, %c0_21, %c0_22], %25 {strides = array<i32>} : memref<8x8x512xf32, #tpu.memory_space<vmem>>, vector<1x1x512xf32>,
    %c0_23 = arith.constant 0 : index
    %c4 = arith.constant 4 : index
    %26 = memref.load %arg0[%c0_23, %c4] : memref<2x8xi32, #tpu.memory_space<smem>>
    %27 = arith.index_cast %26 : i32 to index
    %c0_24 = arith.constant 0 : index
    %28 = vector.load %arg1[%27, %c0_24] : memref<50x512xf32, #tpu.memory_space<vmem>>, vector<1x512xf32>
    %c4_25 = arith.constant 4 : index
    %c0_26 = arith.constant 0 : index
    %c0_27 = arith.constant 0 : index
    %29 = vector.load %arg6[%c4_25, %c0_26, %c0_27] : memref<8x8x512xf32, #tpu.memory_space<vmem>>, vector<1x1x512xf32>
    %30 = vector.shape_cast %29 : vector<1x1x512xf32> to vector<1x512xf32>
    %31 = vector.shape_cast %28 : vector<1x512xf32> to vector<1x1x512xf32>
    tpu.vector_store %arg6[%c4_25, %c0_26, %c0_27], %31 {strides = array<i32>} : memref<8x8x512xf32, #tpu.memory_space<vmem>>, vector<1x1x512xf32>,
    %c0_28 = arith.constant 0 : index
    %c5 = arith.constant 5 : index
    %32 = memref.load %arg0[%c0_28, %c5] : memref<2x8xi32, #tpu.memory_space<smem>>
    %33 = arith.index_cast %32 : i32 to index
    %c0_29 = arith.constant 0 : index
    %34 = vector.load %arg1[%33, %c0_29] : memref<50x512xf32, #tpu.memory_space<vmem>>, vector<1x512xf32>
    %c5_30 = arith.constant 5 : index
    %c0_31 = arith.constant 0 : index
    %c0_32 = arith.constant 0 : index
    %35 = vector.load %arg6[%c5_30, %c0_31, %c0_32] : memref<8x8x512xf32, #tpu.memory_space<vmem>>, vector<1x1x512xf32>
    %36 = vector.shape_cast %35 : vector<1x1x512xf32> to vector<1x512xf32>
    %37 = vector.shape_cast %34 : vector<1x512xf32> to vector<1x1x512xf32>
    tpu.vector_store %arg6[%c5_30, %c0_31, %c0_32], %37 {strides = array<i32>} : memref<8x8x512xf32, #tpu.memory_space<vmem>>, vector<1x1x512xf32>,
    %c0_33 = arith.constant 0 : index
    %c6 = arith.constant 6 : index
    %38 = memref.load %arg0[%c0_33, %c6] : memref<2x8xi32, #tpu.memory_space<smem>>
    %39 = arith.index_cast %38 : i32 to index
    %c0_34 = arith.constant 0 : index
    %40 = vector.load %arg1[%39, %c0_34] : memref<50x512xf32, #tpu.memory_space<vmem>>, vector<1x512xf32>
    %c6_35 = arith.constant 6 : index
    %c0_36 = arith.constant 0 : index
    %c0_37 = arith.constant 0 : index
    %41 = vector.load %arg6[%c6_35, %c0_36, %c0_37] : memref<8x8x512xf32, #tpu.memory_space<vmem>>, vector<1x1x512xf32>
    %42 = vector.shape_cast %41 : vector<1x1x512xf32> to vector<1x512xf32>
    %43 = vector.shape_cast %40 : vector<1x512xf32> to vector<1x1x512xf32>
    tpu.vector_store %arg6[%c6_35, %c0_36, %c0_37], %43 {strides = array<i32>} : memref<8x8x512xf32, #tpu.memory_space<vmem>>, vector<1x1x512xf32>,
    %c0_38 = arith.constant 0 : index
    %c7 = arith.constant 7 : index
    %44 = memref.load %arg0[%c0_38, %c7] : memref<2x8xi32, #tpu.memory_space<smem>>
    %45 = arith.index_cast %44 : i32 to index
    %c0_39 = arith.constant 0 : index
    %46 = vector.load %arg1[%45, %c0_39] : memref<50x512xf32, #tpu.memory_space<vmem>>, vector<1x512xf32>
    %c7_40 = arith.constant 7 : index
    %c0_41 = arith.constant 0 : index
    %c0_42 = arith.constant 0 : index
    %47 = vector.load %arg6[%c7_40, %c0_41, %c0_42] : memref<8x8x512xf32, #tpu.memory_space<vmem>>, vector<1x1x512xf32>
    %48 = vector.shape_cast %47 : vector<1x1x512xf32> to vector<1x512xf32>
    %49 = vector.shape_cast %46 : vector<1x512xf32> to vector<1x1x512xf32>
    tpu.vector_store %arg6[%c7_40, %c0_41, %c0_42], %49 {strides = array<i32>} : memref<8x8x512xf32, #tpu.memory_space<vmem>>, vector<1x1x512xf32>,
    %c1_43 = arith.constant 1 : index
    %c0_44 = arith.constant 0 : index
    %50 = memref.load %arg0[%c1_43, %c0_44] : memref<2x8xi32, #tpu.memory_space<smem>>
    %51 = arith.index_cast %50 : i32 to index
    %c0_45 = arith.constant 0 : index
    %52 = vector.load %arg1[%51, %c0_45] : memref<50x512xf32, #tpu.memory_space<vmem>>, vector<1x512xf32>
    %c0_46 = arith.constant 0 : index
    %c1_47 = arith.constant 1 : index
    %c0_48 = arith.constant 0 : index
    %53 = vector.load %arg6[%c0_46, %c1_47, %c0_48] : memref<8x8x512xf32, #tpu.memory_space<vmem>>, vector<1x1x512xf32>
    %54 = vector.shape_cast %53 : vector<1x1x512xf32> to vector<1x512xf32>
    %55 = vector.shape_cast %52 : vector<1x512xf32> to vector<1x1x512xf32>
    tpu.vector_store %arg6[%c0_46, %c1_47, %c0_48], %55 {strides = array<i32>} : memref<8x8x512xf32, #tpu.memory_space<vmem>>, vector<1x1x512xf32>,
    %c1_49 = arith.constant 1 : index
    %c1_50 = arith.constant 1 : index
    %56 = memref.load %arg0[%c1_49, %c1_50] : memref<2x8xi32, #tpu.memory_space<smem>>
    %57 = arith.index_cast %56 : i32 to index
    %c0_51 = arith.constant 0 : index
    %58 = vector.load %arg1[%57, %c0_51] : memref<50x512xf32, #tpu.memory_space<vmem>>, vector<1x512xf32>
    %c1_52 = arith.constant 1 : index
    %c1_53 = arith.constant 1 : index
    %c0_54 = arith.constant 0 : index
    %59 = vector.load %arg6[%c1_52, %c1_53, %c0_54] : memref<8x8x512xf32, #tpu.memory_space<vmem>>, vector<1x1x512xf32>
    %60 = vector.shape_cast %59 : vector<1x1x512xf32> to vector<1x512xf32>
    %61 = vector.shape_cast %58 : vector<1x512xf32> to vector<1x1x512xf32>
    tpu.vector_store %arg6[%c1_52, %c1_53, %c0_54], %61 {strides = array<i32>} : memref<8x8x512xf32, #tpu.memory_space<vmem>>, vector<1x1x512xf32>,
    %c1_55 = arith.constant 1 : index
    %c2_56 = arith.constant 2 : index
    %62 = memref.load %arg0[%c1_55, %c2_56] : memref<2x8xi32, #tpu.memory_space<smem>>
    %63 = arith.index_cast %62 : i32 to index
    %c0_57 = arith.constant 0 : index
    %64 = vector.load %arg1[%63, %c0_57] : memref<50x512xf32, #tpu.memory_space<vmem>>, vector<1x512xf32>
    %c2_58 = arith.constant 2 : index
    %c1_59 = arith.constant 1 : index
    %c0_60 = arith.constant 0 : index
    %65 = vector.load %arg6[%c2_58, %c1_59, %c0_60] : memref<8x8x512xf32, #tpu.memory_space<vmem>>, vector<1x1x512xf32>
    %66 = vector.shape_cast %65 : vector<1x1x512xf32> to vector<1x512xf32>
    %67 = vector.shape_cast %64 : vector<1x512xf32> to vector<1x1x512xf32>
    tpu.vector_store %arg6[%c2_58, %c1_59, %c0_60], %67 {strides = array<i32>} : memref<8x8x512xf32, #tpu.memory_space<vmem>>, vector<1x1x512xf32>,
    %c1_61 = arith.constant 1 : index
    %c3_62 = arith.constant 3 : index
    %68 = memref.load %arg0[%c1_61, %c3_62] : memref<2x8xi32, #tpu.memory_space<smem>>
    %69 = arith.index_cast %68 : i32 to index
    %c0_63 = arith.constant 0 : index
    %70 = vector.load %arg1[%69, %c0_63] : memref<50x512xf32, #tpu.memory_space<vmem>>, vector<1x512xf32>
    %c3_64 = arith.constant 3 : index
    %c1_65 = arith.constant 1 : index
    %c0_66 = arith.constant 0 : index
    %71 = vector.load %arg6[%c3_64, %c1_65, %c0_66] : memref<8x8x512xf32, #tpu.memory_space<vmem>>, vector<1x1x512xf32>
    %72 = vector.shape_cast %71 : vector<1x1x512xf32> to vector<1x512xf32>
    %73 = vector.shape_cast %70 : vector<1x512xf32> to vector<1x1x512xf32>
    tpu.vector_store %arg6[%c3_64, %c1_65, %c0_66], %73 {strides = array<i32>} : memref<8x8x512xf32, #tpu.memory_space<vmem>>, vector<1x1x512xf32>,
    %c1_67 = arith.constant 1 : index
    %c4_68 = arith.constant 4 : index
    %74 = memref.load %arg0[%c1_67, %c4_68] : memref<2x8xi32, #tpu.memory_space<smem>>
    %75 = arith.index_cast %74 : i32 to index
    %c0_69 = arith.constant 0 : index
    %76 = vector.load %arg1[%75, %c0_69] : memref<50x512xf32, #tpu.memory_space<vmem>>, vector<1x512xf32>
    %c4_70 = arith.constant 4 : index
    %c1_71 = arith.constant 1 : index
    %c0_72 = arith.constant 0 : index
    %77 = vector.load %arg6[%c4_70, %c1_71, %c0_72] : memref<8x8x512xf32, #tpu.memory_space<vmem>>, vector<1x1x512xf32>
    %78 = vector.shape_cast %77 : vector<1x1x512xf32> to vector<1x512xf32>
    %79 = vector.shape_cast %76 : vector<1x512xf32> to vector<1x1x512xf32>
    tpu.vector_store %arg6[%c4_70, %c1_71, %c0_72], %79 {strides = array<i32>} : memref<8x8x512xf32, #tpu.memory_space<vmem>>, vector<1x1x512xf32>,
    %c1_73 = arith.constant 1 : index
    %c5_74 = arith.constant 5 : index
    %80 = memref.load %arg0[%c1_73, %c5_74] : memref<2x8xi32, #tpu.memory_space<smem>>
    %81 = arith.index_cast %80 : i32 to index
    %c0_75 = arith.constant 0 : index
    %82 = vector.load %arg1[%81, %c0_75] : memref<50x512xf32, #tpu.memory_space<vmem>>, vector<1x512xf32>
    %c5_76 = arith.constant 5 : index
    %c1_77 = arith.constant 1 : index
    %c0_78 = arith.constant 0 : index
    %83 = vector.load %arg6[%c5_76, %c1_77, %c0_78] : memref<8x8x512xf32, #tpu.memory_space<vmem>>, vector<1x1x512xf32>
    %84 = vector.shape_cast %83 : vector<1x1x512xf32> to vector<1x512xf32>
    %85 = vector.shape_cast %82 : vector<1x512xf32> to vector<1x1x512xf32>
    tpu.vector_store %arg6[%c5_76, %c1_77, %c0_78], %85 {strides = array<i32>} : memref<8x8x512xf32, #tpu.memory_space<vmem>>, vector<1x1x512xf32>,
    %c1_79 = arith.constant 1 : index
    %c6_80 = arith.constant 6 : index
    %86 = memref.load %arg0[%c1_79, %c6_80] : memref<2x8xi32, #tpu.memory_space<smem>>
    %87 = arith.index_cast %86 : i32 to index
    %c0_81 = arith.constant 0 : index
    %88 = vector.load %arg1[%87, %c0_81] : memref<50x512xf32, #tpu.memory_space<vmem>>, vector<1x512xf32>
    %c6_82 = arith.constant 6 : index
    %c1_83 = arith.constant 1 : index
    %c0_84 = arith.constant 0 : index
    %89 = vector.load %arg6[%c6_82, %c1_83, %c0_84] : memref<8x8x512xf32, #tpu.memory_space<vmem>>, vector<1x1x512xf32>
    %90 = vector.shape_cast %89 : vector<1x1x512xf32> to vector<1x512xf32>
    %91 = vector.shape_cast %88 : vector<1x512xf32> to vector<1x1x512xf32>
    tpu.vector_store %arg6[%c6_82, %c1_83, %c0_84], %91 {strides = array<i32>} : memref<8x8x512xf32, #tpu.memory_space<vmem>>, vector<1x1x512xf32>,
    %c1_85 = arith.constant 1 : index
    %c7_86 = arith.constant 7 : index
    %92 = memref.load %arg0[%c1_85, %c7_86] : memref<2x8xi32, #tpu.memory_space<smem>>
    %93 = arith.index_cast %92 : i32 to index
    %c0_87 = arith.constant 0 : index
    %94 = vector.load %arg1[%93, %c0_87] : memref<50x512xf32, #tpu.memory_space<vmem>>, vector<1x512xf32>
    %c7_88 = arith.constant 7 : index
    %c1_89 = arith.constant 1 : index
    %c0_90 = arith.constant 0 : index
    %95 = vector.load %arg6[%c7_88, %c1_89, %c0_90] : memref<8x8x512xf32, #tpu.memory_space<vmem>>, vector<1x1x512xf32>
    %96 = vector.shape_cast %95 : vector<1x1x512xf32> to vector<1x512xf32>
    %97 = vector.shape_cast %94 : vector<1x512xf32> to vector<1x1x512xf32>
    tpu.vector_store %arg6[%c7_88, %c1_89, %c0_90], %97 {strides = array<i32>} : memref<8x8x512xf32, #tpu.memory_space<vmem>>, vector<1x1x512xf32>,
    %cst_91 = arith.constant 0.000000e+00 : f32
    %98 = vector.broadcast %cst_91 : f32 to vector<8x128xf32>
    %cst_92 = arith.constant 0.000000e+00 : f32
    %99 = vector.broadcast %cst_92 : f32 to vector<8x128xf32>
    %c0_i32 = arith.constant 0 : i32
    %100 = arith.index_cast %c0_i32 : i32 to index
    %c0_93 = arith.constant 0 : index
    %c0_94 = arith.constant 0 : index
    %101 = vector.load %arg6[%100, %c0_93, %c0_94] : memref<8x8x512xf32, #tpu.memory_space<vmem>>, vector<1x8x512xf32>
    %102 = vector.shape_cast %101 : vector<1x8x512xf32> to vector<8x512xf32>
    %103 = arith.truncf %98 : vector<8x128xf32> to vector<8x128xbf16>
    %c0_95 = arith.constant 0 : index
    %c0_96 = arith.constant 0 : index
    %104 = vector.load %arg2[%c0_95, %c0_96] : memref<128x512xbf16, #tpu.memory_space<vmem>>, vector<128x512xbf16>
    %cst_97 = arith.constant dense<0.000000e+00> : vector<8x512xf32>
    %105 = tpu.matmul %103, %104, %cst_97 {dimension_numbers = #tpu.dot_dimension_numbers<[1], [0], [0], [1], [0, 0, 1, 1], [], []>} : vector<8x128xbf16>, vector<128x512xbf16>, vector<8x512xf32> -> vector<8x512xf32>
    %106 = arith.addf %102, %105 : vector<8x512xf32>
    %107 = vector.extract_strided_slice %106 {offsets = [0, 0], sizes = [8, 384], strides = [1, 1]} : vector<8x512xf32> to vector<8x384xf32>
    %108 = arith.negf %107 : vector<8x384xf32>
    %109 = math.exp %108 : vector<8x384xf32>
    %cst_98 = arith.constant 1.000000e+00 : f32
    %110 = vector.broadcast %cst_98 : f32 to vector<8x384xf32>
    %111 = arith.addf %110, %109 : vector<8x384xf32>
    %112 = arith.divf %110, %111 : vector<8x384xf32>
    %113 = vector.extract_strided_slice %112 {offsets = [0, 0], sizes = [8, 128], strides = [1, 1]} : vector<8x384xf32> to vector<8x128xf32>
    %114 = vector.extract_strided_slice %112 {offsets = [0, 128], sizes = [8, 128], strides = [1, 1]} : vector<8x384xf32> to vector<8x128xf32>
    %115 = vector.extract_strided_slice %112 {offsets = [0, 256], sizes = [8, 128], strides = [1, 1]} : vector<8x384xf32> to vector<8x128xf32>
    %116 = vector.extract_strided_slice %106 {offsets = [0, 384], sizes = [8, 128], strides = [1, 1]} : vector<8x512xf32> to vector<8x128xf32>
    %117 = math.tanh %116 : vector<8x128xf32>
    %118 = arith.mulf %114, %99 : vector<8x128xf32>
    %119 = arith.mulf %113, %117 : vector<8x128xf32>
    %120 = arith.addf %118, %119 : vector<8x128xf32>
    %121 = math.tanh %120 : vector<8x128xf32>
    %122 = arith.mulf %115, %121 : vector<8x128xf32>
    %c1_i32 = arith.constant 1 : i32
    %123 = arith.index_cast %c1_i32 : i32 to index
    %c0_99 = arith.constant 0 : index
    %c0_100 = arith.constant 0 : index
    %124 = vector.load %arg6[%123, %c0_99, %c0_100] : memref<8x8x512xf32, #tpu.memory_space<vmem>>, vector<1x8x512xf32>
    %125 = vector.shape_cast %124 : vector<1x8x512xf32> to vector<8x512xf32>
    %126 = arith.truncf %122 : vector<8x128xf32> to vector<8x128xbf16>
    %c0_101 = arith.constant 0 : index
    %c0_102 = arith.constant 0 : index
    %127 = vector.load %arg2[%c0_101, %c0_102] : memref<128x512xbf16, #tpu.memory_space<vmem>>, vector<128x512xbf16>
    %cst_103 = arith.constant dense<0.000000e+00> : vector<8x512xf32>
    %128 = tpu.matmul %126, %127, %cst_103 {dimension_numbers = #tpu.dot_dimension_numbers<[1], [0], [0], [1], [0, 0, 1, 1], [], []>} : vector<8x128xbf16>, vector<128x512xbf16>, vector<8x512xf32> -> vector<8x512xf32>
    %129 = arith.addf %125, %128 : vector<8x512xf32>
    %130 = vector.extract_strided_slice %129 {offsets = [0, 0], sizes = [8, 384], strides = [1, 1]} : vector<8x512xf32> to vector<8x384xf32>
    %131 = arith.negf %130 : vector<8x384xf32>
    %132 = math.exp %131 : vector<8x384xf32>
    %cst_104 = arith.constant 1.000000e+00 : f32
    %133 = vector.broadcast %cst_104 : f32 to vector<8x384xf32>
    %134 = arith.addf %133, %132 : vector<8x384xf32>
    %135 = arith.divf %133, %134 : vector<8x384xf32>
    %136 = vector.extract_strided_slice %135 {offsets = [0, 0], sizes = [8, 128], strides = [1, 1]} : vector<8x384xf32> to vector<8x128xf32>
    %137 = vector.extract_strided_slice %135 {offsets = [0, 128], sizes = [8, 128], strides = [1, 1]} : vector<8x384xf32> to vector<8x128xf32>
    %138 = vector.extract_strided_slice %135 {offsets = [0, 256], sizes = [8, 128], strides = [1, 1]} : vector<8x384xf32> to vector<8x128xf32>
    %139 = vector.extract_strided_slice %129 {offsets = [0, 384], sizes = [8, 128], strides = [1, 1]} : vector<8x512xf32> to vector<8x128xf32>
    %140 = math.tanh %139 : vector<8x128xf32>
    %141 = arith.mulf %137, %120 : vector<8x128xf32>
    %142 = arith.mulf %136, %140 : vector<8x128xf32>
    %143 = arith.addf %141, %142 : vector<8x128xf32>
    %144 = math.tanh %143 : vector<8x128xf32>
    %145 = arith.mulf %138, %144 : vector<8x128xf32>
    %c2_i32 = arith.constant 2 : i32
    %146 = arith.index_cast %c2_i32 : i32 to index
    %c0_105 = arith.constant 0 : index
    %c0_106 = arith.constant 0 : index
    %147 = vector.load %arg6[%146, %c0_105, %c0_106] : memref<8x8x512xf32, #tpu.memory_space<vmem>>, vector<1x8x512xf32>
    %148 = vector.shape_cast %147 : vector<1x8x512xf32> to vector<8x512xf32>
    %149 = arith.truncf %145 : vector<8x128xf32> to vector<8x128xbf16>
    %c0_107 = arith.constant 0 : index
    %c0_108 = arith.constant 0 : index
    %150 = vector.load %arg2[%c0_107, %c0_108] : memref<128x512xbf16, #tpu.memory_space<vmem>>, vector<128x512xbf16>
    %cst_109 = arith.constant dense<0.000000e+00> : vector<8x512xf32>
    %151 = tpu.matmul %149, %150, %cst_109 {dimension_numbers = #tpu.dot_dimension_numbers<[1], [0], [0], [1], [0, 0, 1, 1], [], []>} : vector<8x128xbf16>, vector<128x512xbf16>, vector<8x512xf32> -> vector<8x512xf32>
    %152 = arith.addf %148, %151 : vector<8x512xf32>
    %153 = vector.extract_strided_slice %152 {offsets = [0, 0], sizes = [8, 384], strides = [1, 1]} : vector<8x512xf32> to vector<8x384xf32>
    %154 = arith.negf %153 : vector<8x384xf32>
    %155 = math.exp %154 : vector<8x384xf32>
    %cst_110 = arith.constant 1.000000e+00 : f32
    %156 = vector.broadcast %cst_110 : f32 to vector<8x384xf32>
    %157 = arith.addf %156, %155 : vector<8x384xf32>
    %158 = arith.divf %156, %157 : vector<8x384xf32>
    %159 = vector.extract_strided_slice %158 {offsets = [0, 0], sizes = [8, 128], strides = [1, 1]} : vector<8x384xf32> to vector<8x128xf32>
    %160 = vector.extract_strided_slice %158 {offsets = [0, 128], sizes = [8, 128], strides = [1, 1]} : vector<8x384xf32> to vector<8x128xf32>
    %161 = vector.extract_strided_slice %158 {offsets = [0, 256], sizes = [8, 128], strides = [1, 1]} : vector<8x384xf32> to vector<8x128xf32>
    %162 = vector.extract_strided_slice %152 {offsets = [0, 384], sizes = [8, 128], strides = [1, 1]} : vector<8x512xf32> to vector<8x128xf32>
    %163 = math.tanh %162 : vector<8x128xf32>
    %164 = arith.mulf %160, %143 : vector<8x128xf32>
    %165 = arith.mulf %159, %163 : vector<8x128xf32>
    %166 = arith.addf %164, %165 : vector<8x128xf32>
    %167 = math.tanh %166 : vector<8x128xf32>
    %168 = arith.mulf %161, %167 : vector<8x128xf32>
    %c3_i32 = arith.constant 3 : i32
    %169 = arith.index_cast %c3_i32 : i32 to index
    %c0_111 = arith.constant 0 : index
    %c0_112 = arith.constant 0 : index
    %170 = vector.load %arg6[%169, %c0_111, %c0_112] : memref<8x8x512xf32, #tpu.memory_space<vmem>>, vector<1x8x512xf32>
    %171 = vector.shape_cast %170 : vector<1x8x512xf32> to vector<8x512xf32>
    %172 = arith.truncf %168 : vector<8x128xf32> to vector<8x128xbf16>
    %c0_113 = arith.constant 0 : index
    %c0_114 = arith.constant 0 : index
    %173 = vector.load %arg2[%c0_113, %c0_114] : memref<128x512xbf16, #tpu.memory_space<vmem>>, vector<128x512xbf16>
    %cst_115 = arith.constant dense<0.000000e+00> : vector<8x512xf32>
    %174 = tpu.matmul %172, %173, %cst_115 {dimension_numbers = #tpu.dot_dimension_numbers<[1], [0], [0], [1], [0, 0, 1, 1], [], []>} : vector<8x128xbf16>, vector<128x512xbf16>, vector<8x512xf32> -> vector<8x512xf32>
    %175 = arith.addf %171, %174 : vector<8x512xf32>
    %176 = vector.extract_strided_slice %175 {offsets = [0, 0], sizes = [8, 384], strides = [1, 1]} : vector<8x512xf32> to vector<8x384xf32>
    %177 = arith.negf %176 : vector<8x384xf32>
    %178 = math.exp %177 : vector<8x384xf32>
    %cst_116 = arith.constant 1.000000e+00 : f32
    %179 = vector.broadcast %cst_116 : f32 to vector<8x384xf32>
    %180 = arith.addf %179, %178 : vector<8x384xf32>
    %181 = arith.divf %179, %180 : vector<8x384xf32>
    %182 = vector.extract_strided_slice %181 {offsets = [0, 0], sizes = [8, 128], strides = [1, 1]} : vector<8x384xf32> to vector<8x128xf32>
    %183 = vector.extract_strided_slice %181 {offsets = [0, 128], sizes = [8, 128], strides = [1, 1]} : vector<8x384xf32> to vector<8x128xf32>
    %184 = vector.extract_strided_slice %181 {offsets = [0, 256], sizes = [8, 128], strides = [1, 1]} : vector<8x384xf32> to vector<8x128xf32>
    %185 = vector.extract_strided_slice %175 {offsets = [0, 384], sizes = [8, 128], strides = [1, 1]} : vector<8x512xf32> to vector<8x128xf32>
    %186 = math.tanh %185 : vector<8x128xf32>
    %187 = arith.mulf %183, %166 : vector<8x128xf32>
    %188 = arith.mulf %182, %186 : vector<8x128xf32>
    %189 = arith.addf %187, %188 : vector<8x128xf32>
    %190 = math.tanh %189 : vector<8x128xf32>
    %191 = arith.mulf %184, %190 : vector<8x128xf32>
    %c4_i32 = arith.constant 4 : i32
    %192 = arith.index_cast %c4_i32 : i32 to index
    %c0_117 = arith.constant 0 : index
    %c0_118 = arith.constant 0 : index
    %193 = vector.load %arg6[%192, %c0_117, %c0_118] : memref<8x8x512xf32, #tpu.memory_space<vmem>>, vector<1x8x512xf32>
    %194 = vector.shape_cast %193 : vector<1x8x512xf32> to vector<8x512xf32>
    %195 = arith.truncf %191 : vector<8x128xf32> to vector<8x128xbf16>
    %c0_119 = arith.constant 0 : index
    %c0_120 = arith.constant 0 : index
    %196 = vector.load %arg2[%c0_119, %c0_120] : memref<128x512xbf16, #tpu.memory_space<vmem>>, vector<128x512xbf16>
    %cst_121 = arith.constant dense<0.000000e+00> : vector<8x512xf32>
    %197 = tpu.matmul %195, %196, %cst_121 {dimension_numbers = #tpu.dot_dimension_numbers<[1], [0], [0], [1], [0, 0, 1, 1], [], []>} : vector<8x128xbf16>, vector<128x512xbf16>, vector<8x512xf32> -> vector<8x512xf32>
    %198 = arith.addf %194, %197 : vector<8x512xf32>
    %199 = vector.extract_strided_slice %198 {offsets = [0, 0], sizes = [8, 384], strides = [1, 1]} : vector<8x512xf32> to vector<8x384xf32>
    %200 = arith.negf %199 : vector<8x384xf32>
    %201 = math.exp %200 : vector<8x384xf32>
    %cst_122 = arith.constant 1.000000e+00 : f32
    %202 = vector.broadcast %cst_122 : f32 to vector<8x384xf32>
    %203 = arith.addf %202, %201 : vector<8x384xf32>
    %204 = arith.divf %202, %203 : vector<8x384xf32>
    %205 = vector.extract_strided_slice %204 {offsets = [0, 0], sizes = [8, 128], strides = [1, 1]} : vector<8x384xf32> to vector<8x128xf32>
    %206 = vector.extract_strided_slice %204 {offsets = [0, 128], sizes = [8, 128], strides = [1, 1]} : vector<8x384xf32> to vector<8x128xf32>
    %207 = vector.extract_strided_slice %204 {offsets = [0, 256], sizes = [8, 128], strides = [1, 1]} : vector<8x384xf32> to vector<8x128xf32>
    %208 = vector.extract_strided_slice %198 {offsets = [0, 384], sizes = [8, 128], strides = [1, 1]} : vector<8x512xf32> to vector<8x128xf32>
    %209 = math.tanh %208 : vector<8x128xf32>
    %210 = arith.mulf %206, %189 : vector<8x128xf32>
    %211 = arith.mulf %205, %209 : vector<8x128xf32>
    %212 = arith.addf %210, %211 : vector<8x128xf32>
    %213 = math.tanh %212 : vector<8x128xf32>
    %214 = arith.mulf %207, %213 : vector<8x128xf32>
    %c5_i32 = arith.constant 5 : i32
    %215 = arith.index_cast %c5_i32 : i32 to index
    %c0_123 = arith.constant 0 : index
    %c0_124 = arith.constant 0 : index
    %216 = vector.load %arg6[%215, %c0_123, %c0_124] : memref<8x8x512xf32, #tpu.memory_space<vmem>>, vector<1x8x512xf32>
    %217 = vector.shape_cast %216 : vector<1x8x512xf32> to vector<8x512xf32>
    %218 = arith.truncf %214 : vector<8x128xf32> to vector<8x128xbf16>
    %c0_125 = arith.constant 0 : index
    %c0_126 = arith.constant 0 : index
    %219 = vector.load %arg2[%c0_125, %c0_126] : memref<128x512xbf16, #tpu.memory_space<vmem>>, vector<128x512xbf16>
    %cst_127 = arith.constant dense<0.000000e+00> : vector<8x512xf32>
    %220 = tpu.matmul %218, %219, %cst_127 {dimension_numbers = #tpu.dot_dimension_numbers<[1], [0], [0], [1], [0, 0, 1, 1], [], []>} : vector<8x128xbf16>, vector<128x512xbf16>, vector<8x512xf32> -> vector<8x512xf32>
    %221 = arith.addf %217, %220 : vector<8x512xf32>
    %222 = vector.extract_strided_slice %221 {offsets = [0, 0], sizes = [8, 384], strides = [1, 1]} : vector<8x512xf32> to vector<8x384xf32>
    %223 = arith.negf %222 : vector<8x384xf32>
    %224 = math.exp %223 : vector<8x384xf32>
    %cst_128 = arith.constant 1.000000e+00 : f32
    %225 = vector.broadcast %cst_128 : f32 to vector<8x384xf32>
    %226 = arith.addf %225, %224 : vector<8x384xf32>
    %227 = arith.divf %225, %226 : vector<8x384xf32>
    %228 = vector.extract_strided_slice %227 {offsets = [0, 0], sizes = [8, 128], strides = [1, 1]} : vector<8x384xf32> to vector<8x128xf32>
    %229 = vector.extract_strided_slice %227 {offsets = [0, 128], sizes = [8, 128], strides = [1, 1]} : vector<8x384xf32> to vector<8x128xf32>
    %230 = vector.extract_strided_slice %227 {offsets = [0, 256], sizes = [8, 128], strides = [1, 1]} : vector<8x384xf32> to vector<8x128xf32>
    %231 = vector.extract_strided_slice %221 {offsets = [0, 384], sizes = [8, 128], strides = [1, 1]} : vector<8x512xf32> to vector<8x128xf32>
    %232 = math.tanh %231 : vector<8x128xf32>
    %233 = arith.mulf %229, %212 : vector<8x128xf32>
    %234 = arith.mulf %228, %232 : vector<8x128xf32>
    %235 = arith.addf %233, %234 : vector<8x128xf32>
    %236 = math.tanh %235 : vector<8x128xf32>
    %237 = arith.mulf %230, %236 : vector<8x128xf32>
    %c6_i32 = arith.constant 6 : i32
    %238 = arith.index_cast %c6_i32 : i32 to index
    %c0_129 = arith.constant 0 : index
    %c0_130 = arith.constant 0 : index
    %239 = vector.load %arg6[%238, %c0_129, %c0_130] : memref<8x8x512xf32, #tpu.memory_space<vmem>>, vector<1x8x512xf32>
    %240 = vector.shape_cast %239 : vector<1x8x512xf32> to vector<8x512xf32>
    %241 = arith.truncf %237 : vector<8x128xf32> to vector<8x128xbf16>
    %c0_131 = arith.constant 0 : index
    %c0_132 = arith.constant 0 : index
    %242 = vector.load %arg2[%c0_131, %c0_132] : memref<128x512xbf16, #tpu.memory_space<vmem>>, vector<128x512xbf16>
    %cst_133 = arith.constant dense<0.000000e+00> : vector<8x512xf32>
    %243 = tpu.matmul %241, %242, %cst_133 {dimension_numbers = #tpu.dot_dimension_numbers<[1], [0], [0], [1], [0, 0, 1, 1], [], []>} : vector<8x128xbf16>, vector<128x512xbf16>, vector<8x512xf32> -> vector<8x512xf32>
    %244 = arith.addf %240, %243 : vector<8x512xf32>
    %245 = vector.extract_strided_slice %244 {offsets = [0, 0], sizes = [8, 384], strides = [1, 1]} : vector<8x512xf32> to vector<8x384xf32>
    %246 = arith.negf %245 : vector<8x384xf32>
    %247 = math.exp %246 : vector<8x384xf32>
    %cst_134 = arith.constant 1.000000e+00 : f32
    %248 = vector.broadcast %cst_134 : f32 to vector<8x384xf32>
    %249 = arith.addf %248, %247 : vector<8x384xf32>
    %250 = arith.divf %248, %249 : vector<8x384xf32>
    %251 = vector.extract_strided_slice %250 {offsets = [0, 0], sizes = [8, 128], strides = [1, 1]} : vector<8x384xf32> to vector<8x128xf32>
    %252 = vector.extract_strided_slice %250 {offsets = [0, 128], sizes = [8, 128], strides = [1, 1]} : vector<8x384xf32> to vector<8x128xf32>
    %253 = vector.extract_strided_slice %250 {offsets = [0, 256], sizes = [8, 128], strides = [1, 1]} : vector<8x384xf32> to vector<8x128xf32>
    %254 = vector.extract_strided_slice %244 {offsets = [0, 384], sizes = [8, 128], strides = [1, 1]} : vector<8x512xf32> to vector<8x128xf32>
    %255 = math.tanh %254 : vector<8x128xf32>
    %256 = arith.mulf %252, %235 : vector<8x128xf32>
    %257 = arith.mulf %251, %255 : vector<8x128xf32>
    %258 = arith.addf %256, %257 : vector<8x128xf32>
    %259 = math.tanh %258 : vector<8x128xf32>
    %260 = arith.mulf %253, %259 : vector<8x128xf32>
    %c7_i32 = arith.constant 7 : i32
    %261 = arith.index_cast %c7_i32 : i32 to index
    %c0_135 = arith.constant 0 : index
    %c0_136 = arith.constant 0 : index
    %262 = vector.load %arg6[%261, %c0_135, %c0_136] : memref<8x8x512xf32, #tpu.memory_space<vmem>>, vector<1x8x512xf32>
    %263 = vector.shape_cast %262 : vector<1x8x512xf32> to vector<8x512xf32>
    %264 = arith.truncf %260 : vector<8x128xf32> to vector<8x128xbf16>
    %c0_137 = arith.constant 0 : index
    %c0_138 = arith.constant 0 : index
    %265 = vector.load %arg2[%c0_137, %c0_138] : memref<128x512xbf16, #tpu.memory_space<vmem>>, vector<128x512xbf16>
    %cst_139 = arith.constant dense<0.000000e+00> : vector<8x512xf32>
    %266 = tpu.matmul %264, %265, %cst_139 {dimension_numbers = #tpu.dot_dimension_numbers<[1], [0], [0], [1], [0, 0, 1, 1], [], []>} : vector<8x128xbf16>, vector<128x512xbf16>, vector<8x512xf32> -> vector<8x512xf32>
    %267 = arith.addf %263, %266 : vector<8x512xf32>
    %268 = vector.extract_strided_slice %267 {offsets = [0, 0], sizes = [8, 384], strides = [1, 1]} : vector<8x512xf32> to vector<8x384xf32>
    %269 = arith.negf %268 : vector<8x384xf32>
    %270 = math.exp %269 : vector<8x384xf32>
    %cst_140 = arith.constant 1.000000e+00 : f32
    %271 = vector.broadcast %cst_140 : f32 to vector<8x384xf32>
    %272 = arith.addf %271, %270 : vector<8x384xf32>
    %273 = arith.divf %271, %272 : vector<8x384xf32>
    %274 = vector.extract_strided_slice %273 {offsets = [0, 0], sizes = [8, 128], strides = [1, 1]} : vector<8x384xf32> to vector<8x128xf32>
    %275 = vector.extract_strided_slice %273 {offsets = [0, 128], sizes = [8, 128], strides = [1, 1]} : vector<8x384xf32> to vector<8x128xf32>
    %276 = vector.extract_strided_slice %273 {offsets = [0, 256], sizes = [8, 128], strides = [1, 1]} : vector<8x384xf32> to vector<8x128xf32>
    %277 = vector.extract_strided_slice %267 {offsets = [0, 384], sizes = [8, 128], strides = [1, 1]} : vector<8x512xf32> to vector<8x128xf32>
    %278 = math.tanh %277 : vector<8x128xf32>
    %279 = arith.mulf %275, %258 : vector<8x128xf32>
    %280 = arith.mulf %274, %278 : vector<8x128xf32>
    %281 = arith.addf %279, %280 : vector<8x128xf32>
    %282 = math.tanh %281 : vector<8x128xf32>
    %283 = arith.mulf %276, %282 : vector<8x128xf32>
    %c8_i32 = arith.constant 8 : i32
    %c0_141 = arith.constant 0 : index
    %c0_142 = arith.constant 0 : index
    %284 = vector.load %arg3[%c0_141, %c0_142] : memref<128x128xf32, #tpu.memory_space<vmem>>, vector<128x128xf32>
    %cst_143 = arith.constant dense<0.000000e+00> : vector<8x128xf32>
    %285 = tpu.matmul %283, %284, %cst_143 {dimension_numbers = #tpu.dot_dimension_numbers<[1], [0], [0], [1], [0, 0, 1, 1], [], []>} : vector<8x128xf32>, vector<128x128xf32>, vector<8x128xf32> -> vector<8x128xf32>
    %c0_144 = arith.constant 0 : index
    %c0_145 = arith.constant 0 : index
    %286 = vector.load %arg4[%c0_144, %c0_145] : memref<1x128xf32, #tpu.memory_space<vmem>>, vector<1x128xf32>
    %287 = vector.broadcast %286 : vector<1x128xf32> to vector<8x128xf32>
    %288 = arith.addf %285, %287 : vector<8x128xf32>
    %289 = arith.negf %288 : vector<8x128xf32>
    %290 = math.exp %289 : vector<8x128xf32>
    %cst_146 = arith.constant 1.000000e+00 : f32
    %291 = vector.broadcast %cst_146 : f32 to vector<8x128xf32>
    %292 = arith.addf %291, %290 : vector<8x128xf32>
    %293 = arith.divf %291, %292 : vector<8x128xf32>
    %c0_147 = arith.constant 0 : index
    %c0_148 = arith.constant 0 : index
    %294 = vector.load %arg5[%c0_147, %c0_148] : memref<8x128xf32, #tpu.memory_space<vmem>>, vector<8x128xf32>
    tpu.vector_store %arg5[%c0_147, %c0_148], %293 {strides = array<i32>} : memref<8x128xf32, #tpu.memory_space<vmem>>, vector<8x128xf32>,
    return
  }
}

</mosaic_0001>

<llo_original>
// kernel: tpu_custom_call.1
$region0: #{tpu_custom_call.1}
  #allocation0 [shape = 'u32[]', space=smem, size = 0x4, offset = 0x4, fixed_abs, tag = 'smem constant byte address 0x4 - core index']
  #allocation1 [shape = 'u32[144,128]{1,0:T(1,128)}', space=vmem, size = 0x12000, scoped, tag = 'internal scratch']
  #allocation2 [shape = 'f32[8,8,512]{2,1,0:T(8,128)}', space=vmem, size = 0x20000, scoped, tag = 'scratch operand']
  %s0 = inlined_call_operand.hbm [shape: s32[2,8], index: 0, kind: input, shape index: {}]
  %s1 = inlined_call_operand.hbm [shape: f32[50,512], index: 1, kind: input, shape index: {}]
  %s2 = inlined_call_operand.hbm [shape: bf16[128,512], index: 2, kind: input, shape index: {}]
  %s3 = inlined_call_operand.hbm [shape: f32[128,128], index: 3, kind: input, shape index: {}]
  %s4 = inlined_call_operand.vmem [shape: f32[1,128], index: 4, kind: input, shape index: {}]
  %s5 = inlined_call_operand.hbm [shape: f32[8,128], index: 5, kind: output, shape index: {}]
  %s6 = sld [smem:[#allocation0]]
  $region46: #{tpu_custom_call.1} parent=0
    _
  %s8 = ssub.s32 1, %s6
  %s9 = scalar_select 0, %s8, %s6
  $region1: #{tpu_custom_call.1} parent=0
    #allocation3 [shape = 'u8[1024]{0}', space=smem, size = 0x400, scoped, tag = 'input window, operand 0, single buffered']
    #allocation4 [shape = 's32[1]{0}', space=sflag, size = 0x4, scoped, tag = 'scoped memory for tpu_custom_call.1']
    #allocation5 [shape = 's32[1]{0}', space=sflag, size = 0x4, scoped, tag = 'scoped memory for tpu_custom_call.1']
    #allocation6 [shape = 's32[1]{0}', space=sflag, size = 0x4, scoped, tag = 'scoped memory for tpu_custom_call.1']
    #allocation7 [shape = 'u8[114688]{0}', space=vmem, size = 0x1c000, scoped, tag = 'input window, operand 1, single buffered']
    #allocation8 [shape = 'u8[131072]{0}', space=vmem, size = 0x20000, scoped, tag = 'input window, operand 2, single buffered']
    #allocation9 [shape = 's32[1]{0}', space=sflag, size = 0x4, scoped, tag = 'scoped memory for tpu_custom_call.1']
    #allocation10 [shape = 'u8[65536]{0}', space=vmem, size = 0x10000, scoped, tag = 'input window, operand 3, single buffered']
    #allocation11 [shape = 'u8[4096]{0}', space=vmem, size = 0x1000, scoped, tag = 'output window, operand 0, single buffered']
    %10 = vsyncpa [#allocation6], 0
    %11 = vsyncpa [#allocation4], 0
    %12 = vsyncpa [#allocation9], 0
    %13 = vsyncpa [#allocation5], 0
    // Predicated region
    $region2: #{tpu_custom_call.1} parent=1 // pred_check
      _
    $region3: #{tpu_custom_call.1} parent=1 // pred_check_branch
      %15 = sbr.rel (0) target = $region5
    $region4: #{tpu_custom_call.1} parent=1 // pred_region
      %s17 = ssub.s32 32, 32
      %18 = vsyncadd [#allocation6], %s17
      %21 = dma.hbm_to_smem %s0, 32, [#allocation3], [#allocation6]
    $region5: #{tpu_custom_call.1} parent=1 // pred_fallthru
      _
    // Predicated region
    $region6: #{tpu_custom_call.1} parent=1 // pred_check
      _
    $region7: #{tpu_custom_call.1} parent=1 // pred_check_branch
      %23 = sbr.rel (0) target = $region9
    $region8: #{tpu_custom_call.1} parent=1 // pred_region
      %s25 = ssub.s32 3584, 3584
      %26 = vsyncadd [#allocation4], %s25
      %s27 = sshll.u32 [#allocation7], 4
      %s28 = int_to_ptr.vmem [resolvable:$true] %s27
      %33 = dma.hbm_to_vmem [thread:$0]  %s1, 3584, %s28, [#allocation4], 512, 512, 32
    $region9: #{tpu_custom_call.1} parent=1 // pred_fallthru
      _
    // Predicated region
    $region10: #{tpu_custom_call.1} parent=1 // pred_check
      _
    $region11: #{tpu_custom_call.1} parent=1 // pred_check_branch
      %35 = sbr.rel (0) target = $region13
    $region12: #{tpu_custom_call.1} parent=1 // pred_region
      %s37 = ssub.s32 4096, 4096
      %38 = vsyncadd [#allocation9], %s37
      %s39 = sshll.u32 [#allocation8], 4
      %s40 = int_to_ptr.vmem [resolvable:$true] %s39
      %45 = dma.hbm_to_vmem [thread:$0]  %s2, 4096, %s40, [#allocation9], 256, 256, 16
    $region13: #{tpu_custom_call.1} parent=1 // pred_fallthru
      _
    // Predicated region
    $region14: #{tpu_custom_call.1} parent=1 // pred_check
      _
    $region15: #{tpu_custom_call.1} parent=1 // pred_check_branch
      %47 = sbr.rel (0) target = $region17
    $region16: #{tpu_custom_call.1} parent=1 // pred_region
      %s49 = ssub.s32 2048, 2048
      %50 = vsyncadd [#allocation9], %s49
      %s51 = sshll.u32 [#allocation10], 4
      %s52 = int_to_ptr.vmem [resolvable:$true] %s51
      %57 = dma.hbm_to_vmem [thread:$0]  %s3, 2048, %s52, [#allocation9], 128, 128, 8
    $region17: #{tpu_custom_call.1} parent=1 // pred_fallthru
      _
    // Predicated region
    $region18: #{tpu_custom_call.1} parent=1 // pred_check
      _
    $region19: #{tpu_custom_call.1} parent=1 // pred_check_branch
      %59 = sbr.rel (0) target = $region21
    $region20: #{tpu_custom_call.1} parent=1 // pred_region
      _
    $region21: #{tpu_custom_call.1} parent=1 // pred_fallthru
      _
    // Predicated region
    $region22: #{tpu_custom_call.1} parent=1 // pred_check
      _
    $region23: #{tpu_custom_call.1} parent=1 // pred_check_branch
      %61 = sbr.rel (0) target = $region25
    $region24: #{tpu_custom_call.1} parent=1 // pred_region
      %62 = dma.done [#allocation6], 32
    $region25: #{tpu_custom_call.1} parent=1 // pred_fallthru
      _
    // Predicated region
    $region26: #{tpu_custom_call.1} parent=1 // pred_check
      _
    $region27: #{tpu_custom_call.1} parent=1 // pred_check_branch
      %64 = sbr.rel (0) target = $region29
    $region28: #{tpu_custom_call.1} parent=1 // pred_region
      %65 = dma.done [#allocation4], 3584
    $region29: #{tpu_custom_call.1} parent=1 // pred_fallthru
      _
    // Predicated region
    $region30: #{tpu_custom_call.1} parent=1 // pred_check
      _
    $region31: #{tpu_custom_call.1} parent=1 // pred_check_branch
      %67 = sbr.rel (0) target = $region33
    $region32: #{tpu_custom_call.1} parent=1 // pred_region
      %68 = dma.done [#allocation9], 4096
    $region33: #{tpu_custom_call.1} parent=1 // pred_fallthru
      _
    // Predicated region
    $region34: #{tpu_custom_call.1} parent=1 // pred_check
      _
    $region35: #{tpu_custom_call.1} parent=1 // pred_check_branch
      %70 = sbr.rel (0) target = $region37
    $region36: #{tpu_custom_call.1} parent=1 // pred_region
      %71 = dma.done [#allocation9], 2048
    $region37: #{tpu_custom_call.1} parent=1 // pred_fallthru
      _
    %72 = sfence
    %74 = vst [vmem:[#allocation2] sm:$0xff] 0.0
    %75 = vst [vmem:[#allocation2 + $0x8] sm:$0xff] 0.0
    %76 = vst [vmem:[#allocation2 + $0x10] sm:$0xff] 0.0
    %77 = vst [vmem:[#allocation2 + $0x18] sm:$0xff] 0.0
    %78 = vst [vmem:[#allocation2 + $0x20] sm:$0xff] 0.0
    %79 = vst [vmem:[#allocation2 + $0x28] sm:$0xff] 0.0
    %80 = vst [vmem:[#allocation2 + $0x30] sm:$0xff] 0.0
    %81 = vst [vmem:[#allocation2 + $0x38] sm:$0xff] 0.0
    %82 = vst [vmem:[#allocation2 + $0x40] sm:$0xff] 0.0
    %83 = vst [vmem:[#allocation2 + $0x48] sm:$0xff] 0.0
    %84 = vst [vmem:[#allocation2 + $0x50] sm:$0xff] 0.0
    %85 = vst [vmem:[#allocation2 + $0x58] sm:$0xff] 0.0
    %86 = vst [vmem:[#allocation2 + $0x60] sm:$0xff] 0.0
    %87 = vst [vmem:[#allocation2 + $0x68] sm:$0xff] 0.0
    %88 = vst [vmem:[#allocation2 + $0x70] sm:$0xff] 0.0
    %89 = vst [vmem:[#allocation2 + $0x78] sm:$0xff] 0.0
    %90 = vst [vmem:[#allocation2 + $0x80] sm:$0xff] 0.0
    %91 = vst [vmem:[#allocation2 + $0x88] sm:$0xff] 0.0
    %92 = vst [vmem:[#allocation2 + $0x90] sm:$0xff] 0.0
    %93 = vst [vmem:[#allocation2 + $0x98] sm:$0xff] 0.0
    %94 = vst [vmem:[#allocation2 + $0xa0] sm:$0xff] 0.0
    %95 = vst [vmem:[#allocation2 + $0xa8] sm:$0xff] 0.0
    %96 = vst [vmem:[#allocation2 + $0xb0] sm:$0xff] 0.0
    %97 = vst [vmem:[#allocation2 + $0xb8] sm:$0xff] 0.0
    %98 = vst [vmem:[#allocation2 + $0xc0] sm:$0xff] 0.0
    %99 = vst [vmem:[#allocation2 + $0xc8] sm:$0xff] 0.0
    %100 = vst [vmem:[#allocation2 + $0xd0] sm:$0xff] 0.0
    %101 = vst [vmem:[#allocation2 + $0xd8] sm:$0xff] 0.0
    %102 = vst [vmem:[#allocation2 + $0xe0] sm:$0xff] 0.0
    %103 = vst [vmem:[#allocation2 + $0xe8] sm:$0xff] 0.0
    %104 = vst [vmem:[#allocation2 + $0xf0] sm:$0xff] 0.0
    %105 = vst [vmem:[#allocation2 + $0xf8] sm:$0xff] 0.0
    %s106 = sld [smem:[#allocation3]]
    %s107 = sshra.s32 %s106, 3
    %s108 = sand.u32 %s106, 7
    %s109 = sshra.s32 %s106, 3
    %s110 = sand.u32 %s106, 7
    %s111 = smul.u32 %s107, 4
    %s112 = smul.u32 %s111, 8
    %s113 = sadd.s32 %s112, %s110
    %s114 = scalar_lea.vmem [#allocation7], %s113
    %v115 = vld [vmem:[%s114] ss:$8 sm:$0xf]
    %v116 = vlaneseq
    %vm117 = vcmp.ge.s32.totalorder %v116, 0
    %vm118 = vcmp.lt.s32.totalorder %v116, 512
    %vm119 = vmand %vm117, %vm118
    %120 = vst.msk [vmem:[#allocation2] ss:$8 sm:$0xf] %vm119, %v115
    %121 = vst.msk [vmem:[#allocation2] ss:$8 sm:$0x0] %vm119, %v115
    %s122 = sld [smem:[#allocation3 + $0x1]]
    %s123 = sshra.s32 %s122, 3
    %s124 = sand.u32 %s122, 7
    %s125 = sshra.s32 %s122, 3
    %s126 = sand.u32 %s122, 7
    %s127 = smul.u32 %s123, 4
    %s128 = smul.u32 %s127, 8
    %s129 = sadd.s32 %s128, %s126
    %s130 = scalar_lea.vmem [#allocation7], %s129
    %v131 = vld [vmem:[%s130] ss:$8 sm:$0xf]
    %s132 = scalar_lea.vmem [#allocation2], 32
    %133 = vst.msk [vmem:[%s132] ss:$8 sm:$0xf] %vm119, %v131
    %134 = vst.msk [vmem:[%s132] ss:$8 sm:$0x0] %vm119, %v131
    %s135 = sld [smem:[#allocation3 + $0x2]]
    %s136 = sshra.s32 %s135, 3
    %s137 = sand.u32 %s135, 7
    %s138 = sshra.s32 %s135, 3
    %s139 = sand.u32 %s135, 7
    %s140 = smul.u32 %s136, 4
    %s141 = smul.u32 %s140, 8
    %s142 = sadd.s32 %s141, %s139
    %s143 = scalar_lea.vmem [#allocation7], %s142
    %v144 = vld [vmem:[%s143] ss:$8 sm:$0xf]
    %s145 = scalar_lea.vmem [#allocation2], 64
    %146 = vst.msk [vmem:[%s145] ss:$8 sm:$0xf] %vm119, %v144
    %147 = vst.msk [vmem:[%s145] ss:$8 sm:$0x0] %vm119, %v144
    %s148 = sld [smem:[#allocation3 + $0x3]]
    %s149 = sshra.s32 %s148, 3
    %s150 = sand.u32 %s148, 7
    %s151 = sshra.s32 %s148, 3
    %s152 = sand.u32 %s148, 7
    %s153 = smul.u32 %s149, 4
    %s154 = smul.u32 %s153, 8
    %s155 = sadd.s32 %s154, %s152
    %s156 = scalar_lea.vmem [#allocation7], %s155
    %v157 = vld [vmem:[%s156] ss:$8 sm:$0xf]
    %s158 = scalar_lea.vmem [#allocation2], 96
    %159 = vst.msk [vmem:[%s158] ss:$8 sm:$0xf] %vm119, %v157
    %160 = vst.msk [vmem:[%s158] ss:$8 sm:$0x0] %vm119, %v157
    %s161 = sld [smem:[#allocation3 + $0x4]]
    %s162 = sshra.s32 %s161, 3
    %s163 = sand.u32 %s161, 7
    %s164 = sshra.s32 %s161, 3
    %s165 = sand.u32 %s161, 7
    %s166 = smul.u32 %s162, 4
    %s167 = smul.u32 %s166, 8
    %s168 = sadd.s32 %s167, %s165
    %s169 = scalar_lea.vmem [#allocation7], %s168
    %v170 = vld [vmem:[%s169] ss:$8 sm:$0xf]
    %s171 = scalar_lea.vmem [#allocation2], 128
    %172 = vst.msk [vmem:[%s171] ss:$8 sm:$0xf] %vm119, %v170
    %173 = vst.msk [vmem:[%s171] ss:$8 sm:$0x0] %vm119, %v170
    %s174 = sld [smem:[#allocation3 + $0x5]]
    %s175 = sshra.s32 %s174, 3
    %s176 = sand.u32 %s174, 7
    %s177 = sshra.s32 %s174, 3
    %s178 = sand.u32 %s174, 7
    %s179 = smul.u32 %s175, 4
    %s180 = smul.u32 %s179, 8
    %s181 = sadd.s32 %s180, %s178
    %s182 = scalar_lea.vmem [#allocation7], %s181
    %v183 = vld [vmem:[%s182] ss:$8 sm:$0xf]
    %s184 = scalar_lea.vmem [#allocation2], 160
    %185 = vst.msk [vmem:[%s184] ss:$8 sm:$0xf] %vm119, %v183
    %186 = vst.msk [vmem:[%s184] ss:$8 sm:$0x0] %vm119, %v183
    %s187 = sld [smem:[#allocation3 + $0x6]]
    %s188 = sshra.s32 %s187, 3
    %s189 = sand.u32 %s187, 7
    %s190 = sshra.s32 %s187, 3
    %s191 = sand.u32 %s187, 7
    %s192 = smul.u32 %s188, 4
    %s193 = smul.u32 %s192, 8
    %s194 = sadd.s32 %s193, %s191
    %s195 = scalar_lea.vmem [#allocation7], %s194
    %v196 = vld [vmem:[%s195] ss:$8 sm:$0xf]
    %s197 = scalar_lea.vmem [#allocation2], 192
    %198 = vst.msk [vmem:[%s197] ss:$8 sm:$0xf] %vm119, %v196
    %199 = vst.msk [vmem:[%s197] ss:$8 sm:$0x0] %vm119, %v196
    %s200 = sld [smem:[#allocation3 + $0x7]]
    %s201 = sshra.s32 %s200, 3
    %s202 = sand.u32 %s200, 7
    %s203 = sshra.s32 %s200, 3
    %s204 = sand.u32 %s200, 7
    %s205 = smul.u32 %s201, 4
    %s206 = smul.u32 %s205, 8
    %s207 = sadd.s32 %s206, %s204
    %s208 = scalar_lea.vmem [#allocation7], %s207
    %v209 = vld [vmem:[%s208] ss:$8 sm:$0xf]
    %s210 = scalar_lea.vmem [#allocation2], 224
    %211 = vst.msk [vmem:[%s210] ss:$8 sm:$0xf] %vm119, %v209
    %212 = vst.msk [vmem:[%s210] ss:$8 sm:$0x0] %vm119, %v209
    %s213 = sld [smem:[#allocation3 + $0x80]]
    %s214 = sshra.s32 %s213, 3
    %s215 = sand.u32 %s213, 7
    %s216 = sshra.s32 %s213, 3
    %s217 = sand.u32 %s213, 7
    %s218 = smul.u32 %s214, 4
    %s219 = smul.u32 %s218, 8
    %s220 = sadd.s32 %s219, %s217
    %s221 = scalar_lea.vmem [#allocation7], %s220
    %v222 = vld [vmem:[%s221] ss:$8 sm:$0xf]
    %s223 = scalar_lea.vmem [#allocation2], 1
    %224 = vst.msk [vmem:[%s223] ss:$8 sm:$0xf] %vm119, %v222
    %225 = vst.msk [vmem:[%s223] ss:$8 sm:$0x0] %vm119, %v222
    %s226 = sld [smem:[#allocation3 + $0x81]]
    %s227 = sshra.s32 %s226, 3
    %s228 = sand.u32 %s226, 7
    %s229 = sshra.s32 %s226, 3
    %s230 = sand.u32 %s226, 7
    %s231 = smul.u32 %s227, 4
    %s232 = smul.u32 %s231, 8
    %s233 = sadd.s32 %s232, %s230
    %s234 = scalar_lea.vmem [#allocation7], %s233
    %v235 = vld [vmem:[%s234] ss:$8 sm:$0xf]
    %s236 = scalar_lea.vmem %s132, 1 [#allocation2]
    %237 = vst.msk [vmem:[%s236] ss:$8 sm:$0xf] %vm119, %v235
    %238 = vst.msk [vmem:[%s236] ss:$8 sm:$0x0] %vm119, %v235
    %s239 = sld [smem:[#allocation3 + $0x82]]
    %s240 = sshra.s32 %s239, 3
    %s241 = sand.u32 %s239, 7
    %s242 = sshra.s32 %s239, 3
    %s243 = sand.u32 %s239, 7
    %s244 = smul.u32 %s240, 4
    %s245 = smul.u32 %s244, 8
    %s246 = sadd.s32 %s245, %s243
    %s247 = scalar_lea.vmem [#allocation7], %s246
    %v248 = vld [vmem:[%s247] ss:$8 sm:$0xf]
    %s249 = scalar_lea.vmem %s145, 1 [#allocation2]
    %250 = vst.msk [vmem:[%s249] ss:$8 sm:$0xf] %vm119, %v248
    %251 = vst.msk [vmem:[%s249] ss:$8 sm:$0x0] %vm119, %v248
    %s252 = sld [smem:[#allocation3 + $0x83]]
    %s253 = sshra.s32 %s252, 3
    %s254 = sand.u32 %s252, 7
    %s255 = sshra.s32 %s252, 3
    %s256 = sand.u32 %s252, 7
    %s257 = smul.u32 %s253, 4
    %s258 = smul.u32 %s257, 8
    %s259 = sadd.s32 %s258, %s256
    %s260 = scalar_lea.vmem [#allocation7], %s259
    %v261 = vld [vmem:[%s260] ss:$8 sm:$0xf]
    %s262 = scalar_lea.vmem %s158, 1 [#allocation2]
    %263 = vst.msk [vmem:[%s262] ss:$8 sm:$0xf] %vm119, %v261
    %264 = vst.msk [vmem:[%s262] ss:$8 sm:$0x0] %vm119, %v261
    %s265 = sld [smem:[#allocation3 + $0x84]]
    %s266 = sshra.s32 %s265, 3
    %s267 = sand.u32 %s265, 7
    %s268 = sshra.s32 %s265, 3
    %s269 = sand.u32 %s265, 7
    %s270 = smul.u32 %s266, 4
    %s271 = smul.u32 %s270, 8
    %s272 = sadd.s32 %s271, %s269
    %s273 = scalar_lea.vmem [#allocation7], %s272
    %v274 = vld [vmem:[%s273] ss:$8 sm:$0xf]
    %s275 = scalar_lea.vmem %s171, 1 [#allocation2]
    %276 = vst.msk [vmem:[%s275] ss:$8 sm:$0xf] %vm119, %v274
    %277 = vst.msk [vmem:[%s275] ss:$8 sm:$0x0] %vm119, %v274
    %s278 = sld [smem:[#allocation3 + $0x85]]
    %s279 = sshra.s32 %s278, 3
    %s280 = sand.u32 %s278, 7
    %s281 = sshra.s32 %s278, 3
    %s282 = sand.u32 %s278, 7
    %s283 = smul.u32 %s279, 4
    %s284 = smul.u32 %s283, 8
    %s285 = sadd.s32 %s284, %s282
    %s286 = scalar_lea.vmem [#allocation7], %s285
    %v287 = vld [vmem:[%s286] ss:$8 sm:$0xf]
    %s288 = scalar_lea.vmem %s184, 1 [#allocation2]
    %289 = vst.msk [vmem:[%s288] ss:$8 sm:$0xf] %vm119, %v287
    %290 = vst.msk [vmem:[%s288] ss:$8 sm:$0x0] %vm119, %v287
    %s291 = sld [smem:[#allocation3 + $0x86]]
    %s292 = sshra.s32 %s291, 3
    %s293 = sand.u32 %s291, 7
    %s294 = sshra.s32 %s291, 3
    %s295 = sand.u32 %s291, 7
    %s296 = smul.u32 %s292, 4
    %s297 = smul.u32 %s296, 8
    %s298 = sadd.s32 %s297, %s295
    %s299 = scalar_lea.vmem [#allocation7], %s298
    %v300 = vld [vmem:[%s299] ss:$8 sm:$0xf]
    %s301 = scalar_lea.vmem %s197, 1 [#allocation2]
    %302 = vst.msk [vmem:[%s301] ss:$8 sm:$0xf] %vm119, %v300
    %303 = vst.msk [vmem:[%s301] ss:$8 sm:$0x0] %vm119, %v300
    %s304 = sld [smem:[#allocation3 + $0x87]]
    %s305 = sshra.s32 %s304, 3
    %s306 = sand.u32 %s304, 7
    %s307 = sshra.s32 %s304, 3
    %s308 = sand.u32 %s304, 7
    %s309 = smul.u32 %s305, 4
    %s310 = smul.u32 %s309, 8
    %s311 = sadd.s32 %s310, %s308
    %s312 = scalar_lea.vmem [#allocation7], %s311
    %v313 = vld [vmem:[%s312] ss:$8 sm:$0xf]
    %s314 = scalar_lea.vmem %s210, 1 [#allocation2]
    %315 = vst.msk [vmem:[%s314] ss:$8 sm:$0xf] %vm119, %v313
    %316 = vst.msk [vmem:[%s314] ss:$8 sm:$0x0] %vm119, %v313
    %v317 = vld [vmem:[#allocation2] sm:$0xff]
    %v318 = vld [vmem:[#allocation2 + $0x8] sm:$0xff]
    %v319 = vld [vmem:[#allocation2 + $0x10] sm:$0xff]
    %v320 = vld [vmem:[#allocation2 + $0x18] sm:$0xff]
    %v321 = vld [vmem:[#allocation8] sm:$0xff]
    %v322 = vld [vmem:[#allocation8 + $0x8] sm:$0xff]
    %v323 = vld [vmem:[#allocation8 + $0x10] sm:$0xff]
    %v324 = vld [vmem:[#allocation8 + $0x18] sm:$0xff]
    %v325 = vld [vmem:[#allocation8 + $0x20] sm:$0xff]
    %v326 = vld [vmem:[#allocation8 + $0x28] sm:$0xff]
    %v327 = vld [vmem:[#allocation8 + $0x30] sm:$0xff]
    %v328 = vld [vmem:[#allocation8 + $0x38] sm:$0xff]
    %v329 = vld [vmem:[#allocation8 + $0x40] sm:$0xff]
    %v330 = vld [vmem:[#allocation8 + $0x48] sm:$0xff]
    %v331 = vld [vmem:[#allocation8 + $0x50] sm:$0xff]
    %v332 = vld [vmem:[#allocation8 + $0x58] sm:$0xff]
    %v333 = vld [vmem:[#allocation8 + $0x60] sm:$0xff]
    %v334 = vld [vmem:[#allocation8 + $0x68] sm:$0xff]
    %v335 = vld [vmem:[#allocation8 + $0x70] sm:$0xff]
    %v336 = vld [vmem:[#allocation8 + $0x78] sm:$0xff]
    %v337 = vld [vmem:[#allocation8 + $0x80] sm:$0xff]
    %v338 = vld [vmem:[#allocation8 + $0x88] sm:$0xff]
    %v339 = vld [vmem:[#allocation8 + $0x90] sm:$0xff]
    %v340 = vld [vmem:[#allocation8 + $0x98] sm:$0xff]
    %v341 = vld [vmem:[#allocation8 + $0xa0] sm:$0xff]
    %v342 = vld [vmem:[#allocation8 + $0xa8] sm:$0xff]
    %v343 = vld [vmem:[#allocation8 + $0xb0] sm:$0xff]
    %v344 = vld [vmem:[#allocation8 + $0xb8] sm:$0xff]
    %v345 = vld [vmem:[#allocation8 + $0xc0] sm:$0xff]
    %v346 = vld [vmem:[#allocation8 + $0xc8] sm:$0xff]
    %v347 = vld [vmem:[#allocation8 + $0xd0] sm:$0xff]
    %v348 = vld [vmem:[#allocation8 + $0xd8] sm:$0xff]
    %v349 = vld [vmem:[#allocation8 + $0xe0] sm:$0xff]
    %v350 = vld [vmem:[#allocation8 + $0xe8] sm:$0xff]
    %v351 = vld [vmem:[#allocation8 + $0xf0] sm:$0xff]
    %v352 = vld [vmem:[#allocation8 + $0xf8] sm:$0xff]
    %v385 = vunpack.c.l.b16 %v321
    %v386 = vunpack.c.h.b16 %v321
    %v387 = vunpack.c.l.b16 %v322
    %v388 = vunpack.c.h.b16 %v322
    %v389 = vunpack.c.l.b16 %v323
    %v390 = vunpack.c.h.b16 %v323
    %v391 = vunpack.c.l.b16 %v324
    %v392 = vunpack.c.h.b16 %v324
    %v393 = vunpack.c.l.b16 %v325
    %v394 = vunpack.c.h.b16 %v325
    %v395 = vunpack.c.l.b16 %v326
    %v396 = vunpack.c.h.b16 %v326
    %v397 = vunpack.c.l.b16 %v327
    %v398 = vunpack.c.h.b16 %v327
    %v399 = vunpack.c.l.b16 %v328
    %v400 = vunpack.c.h.b16 %v328
    %v401 = vunpack.c.l.b16 %v329
    %v402 = vunpack.c.h.b16 %v329
    %v403 = vunpack.c.l.b16 %v330
    %v404 = vunpack.c.h.b16 %v330
    %v405 = vunpack.c.l.b16 %v331
    %v406 = vunpack.c.h.b16 %v331
    %v407 = vunpack.c.l.b16 %v332
    %v408 = vunpack.c.h.b16 %v332
    %v409 = vunpack.c.l.b16 %v333
    %v410 = vunpack.c.h.b16 %v333
    %v411 = vunpack.c.l.b16 %v334
    %v412 = vunpack.c.h.b16 %v334
    %v413 = vunpack.c.l.b16 %v335
    %v414 = vunpack.c.h.b16 %v335
    %v415 = vunpack.c.l.b16 %v336
    %v416 = vunpack.c.h.b16 %v336
    %v417 = vunpack.c.l.b16 %v337
    %v418 = vunpack.c.h.b16 %v337
    %v419 = vunpack.c.l.b16 %v338
    %v420 = vunpack.c.h.b16 %v338
    %v421 = vunpack.c.l.b16 %v339
    %v422 = vunpack.c.h.b16 %v339
    %v423 = vunpack.c.l.b16 %v340
    %v424 = vunpack.c.h.b16 %v340
    %v425 = vunpack.c.l.b16 %v341
    %v426 = vunpack.c.h.b16 %v341
    %v427 = vunpack.c.l.b16 %v342
    %v428 = vunpack.c.h.b16 %v342
    %v429 = vunpack.c.l.b16 %v343
    %v430 = vunpack.c.h.b16 %v343
    %v431 = vunpack.c.l.b16 %v344
    %v432 = vunpack.c.h.b16 %v344
    %v433 = vunpack.c.l.b16 %v345
    %v434 = vunpack.c.h.b16 %v345
    %v435 = vunpack.c.l.b16 %v346
    %v436 = vunpack.c.h.b16 %v346
    %v437 = vunpack.c.l.b16 %v347
    %v438 = vunpack.c.h.b16 %v347
    %v439 = vunpack.c.l.b16 %v348
    %v440 = vunpack.c.h.b16 %v348
    %v441 = vunpack.c.l.b16 %v349
    %v442 = vunpack.c.h.b16 %v349
    %v443 = vunpack.c.l.b16 %v350
    %v444 = vunpack.c.h.b16 %v350
    %v445 = vunpack.c.l.b16 %v351
    %v446 = vunpack.c.h.b16 %v351
    %v447 = vunpack.c.l.b16 %v352
    %v448 = vunpack.c.h.b16 %v352
    %v449 = vpack.c.b16 %v389, %v385
    %v450 = vpack.c.b16 %v390, %v386
    %v451 = vpack.c.b16 %v391, %v387
    %v452 = vpack.c.b16 %v392, %v388
    %v453 = vpack.c.b16 %v397, %v393
    %v454 = vpack.c.b16 %v398, %v394
    %v455 = vpack.c.b16 %v399, %v395
    %v456 = vpack.c.b16 %v400, %v396
    %v457 = vpack.c.b16 %v405, %v401
    %v458 = vpack.c.b16 %v406, %v402
    %v459 = vpack.c.b16 %v407, %v403
    %v460 = vpack.c.b16 %v408, %v404
    %v461 = vpack.c.b16 %v413, %v409
    %v462 = vpack.c.b16 %v414, %v410
    %v463 = vpack.c.b16 %v415, %v411
    %v464 = vpack.c.b16 %v416, %v412
    %v465 = vpack.c.b16 %v421, %v417
    %v466 = vpack.c.b16 %v422, %v418
    %v467 = vpack.c.b16 %v423, %v419
    %v468 = vpack.c.b16 %v424, %v420
    %v469 = vpack.c.b16 %v429, %v425
    %v470 = vpack.c.b16 %v430, %v426
    %v471 = vpack.c.b16 %v431, %v427
    %v472 = vpack.c.b16 %v432, %v428
    %v473 = vpack.c.b16 %v437, %v433
    %v474 = vpack.c.b16 %v438, %v434
    %v475 = vpack.c.b16 %v439, %v435
    %v476 = vpack.c.b16 %v440, %v436
    %v477 = vpack.c.b16 %v445, %v441
    %v478 = vpack.c.b16 %v446, %v442
    %v479 = vpack.c.b16 %v447, %v443
    %v480 = vpack.c.b16 %v448, %v444
    %513 = vmatprep.subr.bf16.mxu0 %v478
    %514 = vmatpush1.bf16.msra.mxu0 %v477
    %515 = vmatprep.subr.bf16.mxu0 %v474
    %516 = vmatpush1.bf16.msra.mxu0 %v473
    %517 = vmatprep.subr.bf16.mxu0 %v470
    %518 = vmatpush1.bf16.msra.mxu0 %v469
    %519 = vmatprep.subr.bf16.mxu0 %v466
    %520 = vmatpush1.bf16.msra.mxu0 %v465
    %521 = vmatprep.subr.bf16.mxu0 %v462
    %522 = vmatpush1.bf16.msra.mxu0 %v461
    %523 = vmatprep.subr.bf16.mxu0 %v458
    %524 = vmatpush1.bf16.msra.mxu0 %v457
    %525 = vmatprep.subr.bf16.mxu0 %v454
    %526 = vmatpush1.bf16.msra.mxu0 %v453
    %527 = vmatprep.subr.bf16.mxu0 %v450
    %528 = vmatpush1.bf16.msra.mxu0 %v449
    %529 = vmatprep.subr.bf16.mxu0 0
    %530 = vmatpush2.bf16.msra.mxu0 0
    %531 = vmatprep.subr.bf16.mxu0 0
    %532 = vmatpush2.bf16.msra.mxu0 0
    %533 = vmatprep.subr.bf16.mxu0 0
    %534 = vmatpush2.bf16.msra.mxu0 0
    %535 = vmatprep.subr.bf16.mxu0 0
    %536 = vmatpush2.bf16.msra.mxu0 0
    %537 = vmatprep.subr.bf16.mxu0 0
    %538 = vmatpush2.bf16.msra.mxu0 0
    %539 = vmatprep.subr.bf16.mxu0 0
    %540 = vmatpush2.bf16.msra.mxu0 0
    %541 = vmatprep.subr.bf16.mxu0 0
    %542 = vmatpush2.bf16.msra.mxu0 0
    %543 = vmatprep.subr.bf16.mxu0 0
    %544 = vmatpush2.bf16.msra.mxu0 0
    %545 = vmatprep.mubr.bf16.mxu0 0
    %546 = vmatmul.mubr.bf16.gmra.mxu0 0
    %v547 = vpop.f32.mrf.mxu0
    %v548 = vadd.f32 0.0, %v547
    %v549 = vpop.f32.mrf.mxu0
    %v550 = vadd.f32 0.0, %v549
    %v551 = vpop.f32.mrf.mxu0
    %v552 = vpop.f32.mrf.mxu0
    %553 = vdwg.mxu0
    %554 = vmatprep.subr.bf16.mxu0 %v480
    %555 = vmatpush1.bf16.msra.mxu0 %v479
    %556 = vmatprep.subr.bf16.mxu0 %v476
    %557 = vmatpush1.bf16.msra.mxu0 %v475
    %558 = vmatprep.subr.bf16.mxu0 %v472
    %559 = vmatpush1.bf16.msra.mxu0 %v471
    %560 = vmatprep.subr.bf16.mxu0 %v468
    %561 = vmatpush1.bf16.msra.mxu0 %v467
    %562 = vmatprep.subr.bf16.mxu0 %v464
    %563 = vmatpush1.bf16.msra.mxu0 %v463
    %564 = vmatprep.subr.bf16.mxu0 %v460
    %565 = vmatpush1.bf16.msra.mxu0 %v459
    %566 = vmatprep.subr.bf16.mxu0 %v456
    %567 = vmatpush1.bf16.msra.mxu0 %v455
    %568 = vmatprep.subr.bf16.mxu0 %v452
    %569 = vmatpush1.bf16.msra.mxu0 %v451
    %570 = vmatprep.subr.bf16.mxu0 0
    %571 = vmatpush2.bf16.msra.mxu0 0
    %572 = vmatprep.subr.bf16.mxu0 0
    %573 = vmatpush2.bf16.msra.mxu0 0
    %574 = vmatprep.subr.bf16.mxu0 0
    %575 = vmatpush2.bf16.msra.mxu0 0
    %576 = vmatprep.subr.bf16.mxu0 0
    %577 = vmatpush2.bf16.msra.mxu0 0
    %578 = vmatprep.subr.bf16.mxu0 0
    %579 = vmatpush2.bf16.msra.mxu0 0
    %580 = vmatprep.subr.bf16.mxu0 0
    %581 = vmatpush2.bf16.msra.mxu0 0
    %582 = vmatprep.subr.bf16.mxu0 0
    %583 = vmatpush2.bf16.msra.mxu0 0
    %584 = vmatprep.subr.bf16.mxu0 0
    %585 = vmatpush2.bf16.msra.mxu0 0
    %586 = vmatprep.mubr.bf16.mxu0 0
    %587 = vmatmul.mubr.bf16.gmra.mxu0 0
    %v588 = vpop.f32.mrf.mxu0
    %v589 = vadd.f32 0.0, %v588
    %v590 = vpop.f32.mrf.mxu0
    %v591 = vadd.f32 0.0, %v590
    %v592 = vpop.f32.mrf.mxu0
    %v593 = vpop.f32.mrf.mxu0
    %594 = vdwg.mxu0
    %v595 = vadd.f32 %v317, %v548
    %v596 = vadd.f32 %v318, %v550
    %v597 = vadd.f32 %v319, %v589
    %v598 = vadd.f32 %v320, %v591
    %v599 = vxor.u32 %v595, 2147483648
    %v600 = vxor.u32 %v596, 2147483648
    %v601 = vxor.u32 %v597, 2147483648
    %v602 = vmul.f32 %v599, 1.442695
    %v603 = vpow.pop %v602
    %v604 = vmul.f32 %v600, 1.442695
    %v605 = vpow.pop %v604
    %v606 = vmul.f32 %v601, 1.442695
    %v607 = vpow.pop %v606
    %v608 = vadd.f32 %v603, 1.0
    %v609 = vadd.f32 %v605, 1.0
    %v610 = vadd.f32 %v607, 1.0
    %v611 = vrcp.pop %v608
    %v612 = vmul.f32 1.0, %v611
    %v613 = vrcp.pop %v609
    %v614 = vmul.f32 1.0, %v613
    %v615 = vrcp.pop %v610
    %v616 = vmul.f32 1.0, %v615
    %v617 = vtanh.pop %v598
    %v618 = vmul.f32 %v614, 0.0
    %v619 = vmul.f32 %v612, %v617
    %v620 = vadd.f32 %v618, %v619
    %v621 = vtanh.pop %v620
    %v622 = vmul.f32 %v616, %v621
    %v623 = vld [vmem:[%s132] sm:$0xff]
    %v624 = vld [vmem:[%s132 + $0x8] sm:$0xff]
    %v625 = vld [vmem:[%s132 + $0x10] sm:$0xff]
    %v626 = vld [vmem:[%s132 + $0x18] sm:$0xff]
    %v627 = vpack.c.bf16 %v622, %v622
    %628 = vmatprep.subr.bf16.mxu0 %v478
    %629 = vmatpush1.bf16.msra.mxu0 %v477
    %630 = vmatprep.subr.bf16.mxu0 %v474
    %631 = vmatpush1.bf16.msra.mxu0 %v473
    %632 = vmatprep.subr.bf16.mxu0 %v470
    %633 = vmatpush1.bf16.msra.mxu0 %v469
    %634 = vmatprep.subr.bf16.mxu0 %v466
    %635 = vmatpush1.bf16.msra.mxu0 %v465
    %636 = vmatprep.subr.bf16.mxu0 %v462
    %637 = vmatpush1.bf16.msra.mxu0 %v461
    %638 = vmatprep.subr.bf16.mxu0 %v458
    %639 = vmatpush1.bf16.msra.mxu0 %v457
    %640 = vmatprep.subr.bf16.mxu0 %v454
    %641 = vmatpush1.bf16.msra.mxu0 %v453
    %642 = vmatprep.subr.bf16.mxu0 %v450
    %643 = vmatpush1.bf16.msra.mxu0 %v449
    %644 = vmatprep.subr.bf16.mxu0 0
    %645 = vmatpush2.bf16.msra.mxu0 0
    %646 = vmatprep.subr.bf16.mxu0 0
    %647 = vmatpush2.bf16.msra.mxu0 0
    %648 = vmatprep.subr.bf16.mxu0 0
    %649 = vmatpush2.bf16.msra.mxu0 0
    %650 = vmatprep.subr.bf16.mxu0 0
    %651 = vmatpush2.bf16.msra.mxu0 0
    %652 = vmatprep.subr.bf16.mxu0 0
    %653 = vmatpush2.bf16.msra.mxu0 0
    %654 = vmatprep.subr.bf16.mxu0 0
    %655 = vmatpush2.bf16.msra.mxu0 0
    %656 = vmatprep.subr.bf16.mxu0 0
    %657 = vmatpush2.bf16.msra.mxu0 0
    %658 = vmatprep.subr.bf16.mxu0 0
    %659 = vmatpush2.bf16.msra.mxu0 0
    %660 = vmatprep.mubr.bf16.mxu0 0
    %661 = vmatmul.mubr.bf16.gmra.mxu0 %v627
    %v662 = vpop.f32.mrf.mxu0
    %v663 = vadd.f32 0.0, %v662
    %v664 = vpop.f32.mrf.mxu0
    %v665 = vadd.f32 0.0, %v664
    %v666 = vpop.f32.mrf.mxu0
    %v667 = vpop.f32.mrf.mxu0
    %668 = vdwg.mxu0
    %669 = vmatprep.subr.bf16.mxu0 %v480
    %670 = vmatpush1.bf16.msra.mxu0 %v479
    %671 = vmatprep.subr.bf16.mxu0 %v476
    %672 = vmatpush1.bf16.msra.mxu0 %v475
    %673 = vmatprep.subr.bf16.mxu0 %v472
    %674 = vmatpush1.bf16.msra.mxu0 %v471
    %675 = vmatprep.subr.bf16.mxu0 %v468
    %676 = vmatpush1.bf16.msra.mxu0 %v467
    %677 = vmatprep.subr.bf16.mxu0 %v464
    %678 = vmatpush1.bf16.msra.mxu0 %v463
    %679 = vmatprep.subr.bf16.mxu0 %v460
    %680 = vmatpush1.bf16.msra.mxu0 %v459
    %681 = vmatprep.subr.bf16.mxu0 %v456
    %682 = vmatpush1.bf16.msra.mxu0 %v455
    %683 = vmatprep.subr.bf16.mxu0 %v452
    %684 = vmatpush1.bf16.msra.mxu0 %v451
    %685 = vmatprep.subr.bf16.mxu0 0
    %686 = vmatpush2.bf16.msra.mxu0 0
    %687 = vmatprep.subr.bf16.mxu0 0
    %688 = vmatpush2.bf16.msra.mxu0 0
    %689 = vmatprep.subr.bf16.mxu0 0
    %690 = vmatpush2.bf16.msra.mxu0 0
    %691 = vmatprep.subr.bf16.mxu0 0
    %692 = vmatpush2.bf16.msra.mxu0 0
    %693 = vmatprep.subr.bf16.mxu0 0
    %694 = vmatpush2.bf16.msra.mxu0 0
    %695 = vmatprep.subr.bf16.mxu0 0
    %696 = vmatpush2.bf16.msra.mxu0 0
    %697 = vmatprep.subr.bf16.mxu0 0
    %698 = vmatpush2.bf16.msra.mxu0 0
    %699 = vmatprep.subr.bf16.mxu0 0
    %700 = vmatpush2.bf16.msra.mxu0 0
    %701 = vmatprep.mubr.bf16.mxu0 0
    %702 = vmatmul.mubr.bf16.gmra.mxu0 %v627
    %v703 = vpop.f32.mrf.mxu0
    %v704 = vadd.f32 0.0, %v703
    %v705 = vpop.f32.mrf.mxu0
    %v706 = vadd.f32 0.0, %v705
    %v707 = vpop.f32.mrf.mxu0
    %v708 = vpop.f32.mrf.mxu0
    %709 = vdwg.mxu0
    %v710 = vadd.f32 %v623, %v663
    %v711 = vadd.f32 %v624, %v665
    %v712 = vadd.f32 %v625, %v704
    %v713 = vadd.f32 %v626, %v706
    %v714 = vxor.u32 %v710, 2147483648
    %v715 = vxor.u32 %v711, 2147483648
    %v716 = vxor.u32 %v712, 2147483648
    %v717 = vmul.f32 %v714, 1.442695
    %v718 = vpow.pop %v717
    %v719 = vmul.f32 %v715, 1.442695
    %v720 = vpow.pop %v719
    %v721 = vmul.f32 %v716, 1.442695
    %v722 = vpow.pop %v721
    %v723 = vadd.f32 %v718, 1.0
    %v724 = vadd.f32 %v720, 1.0
    %v725 = vadd.f32 %v722, 1.0
    %v726 = vrcp.pop %v723
    %v727 = vmul.f32 1.0, %v726
    %v728 = vrcp.pop %v724
    %v729 = vmul.f32 1.0, %v728
    %v730 = vrcp.pop %v725
    %v731 = vmul.f32 1.0, %v730
    %v732 = vtanh.pop %v713
    %v733 = vmul.f32 %v729, %v620
    %v734 = vmul.f32 %v727, %v732
    %v735 = vadd.f32 %v733, %v734
    %v736 = vtanh.pop %v735
    %v737 = vmul.f32 %v731, %v736
    %v738 = vld [vmem:[%s145] sm:$0xff]
    %v739 = vld [vmem:[%s145 + $0x8] sm:$0xff]
    %v740 = vld [vmem:[%s145 + $0x10] sm:$0xff]
    %v741 = vld [vmem:[%s145 + $0x18] sm:$0xff]
    %v742 = vpack.c.bf16 %v737, %v737
    %743 = vmatprep.subr.bf16.mxu0 %v478
    %744 = vmatpush1.bf16.msra.mxu0 %v477
    %745 = vmatprep.subr.bf16.mxu0 %v474
    %746 = vmatpush1.bf16.msra.mxu0 %v473
    %747 = vmatprep.subr.bf16.mxu0 %v470
    %748 = vmatpush1.bf16.msra.mxu0 %v469
    %749 = vmatprep.subr.bf16.mxu0 %v466
    %750 = vmatpush1.bf16.msra.mxu0 %v465
    %751 = vmatprep.subr.bf16.mxu0 %v462
    %752 = vmatpush1.bf16.msra.mxu0 %v461
    %753 = vmatprep.subr.bf16.mxu0 %v458
    %754 = vmatpush1.bf16.msra.mxu0 %v457
    %755 = vmatprep.subr.bf16.mxu0 %v454
    %756 = vmatpush1.bf16.msra.mxu0 %v453
    %757 = vmatprep.subr.bf16.mxu0 %v450
    %758 = vmatpush1.bf16.msra.mxu0 %v449
    %759 = vmatprep.subr.bf16.mxu0 0
    %760 = vmatpush2.bf16.msra.mxu0 0
    %761 = vmatprep.subr.bf16.mxu0 0
    %762 = vmatpush2.bf16.msra.mxu0 0
    %763 = vmatprep.subr.bf16.mxu0 0
    %764 = vmatpush2.bf16.msra.mxu0 0
    %765 = vmatprep.subr.bf16.mxu0 0
    %766 = vmatpush2.bf16.msra.mxu0 0
    %767 = vmatprep.subr.bf16.mxu0 0
    %768 = vmatpush2.bf16.msra.mxu0 0
    %769 = vmatprep.subr.bf16.mxu0 0
    %770 = vmatpush2.bf16.msra.mxu0 0
    %771 = vmatprep.subr.bf16.mxu0 0
    %772 = vmatpush2.bf16.msra.mxu0 0
    %773 = vmatprep.subr.bf16.mxu0 0
    %774 = vmatpush2.bf16.msra.mxu0 0
    %775 = vmatprep.mubr.bf16.mxu0 0
    %776 = vmatmul.mubr.bf16.gmra.mxu0 %v742
    %v777 = vpop.f32.mrf.mxu0
    %v778 = vadd.f32 0.0, %v777
    %v779 = vpop.f32.mrf.mxu0
    %v780 = vadd.f32 0.0, %v779
    %v781 = vpop.f32.mrf.mxu0
    %v782 = vpop.f32.mrf.mxu0
    %783 = vdwg.mxu0
    %784 = vmatprep.subr.bf16.mxu0 %v480
    %785 = vmatpush1.bf16.msra.mxu0 %v479
    %786 = vmatprep.subr.bf16.mxu0 %v476
    %787 = vmatpush1.bf16.msra.mxu0 %v475
    %788 = vmatprep.subr.bf16.mxu0 %v472
    %789 = vmatpush1.bf16.msra.mxu0 %v471
    %790 = vmatprep.subr.bf16.mxu0 %v468
    %791 = vmatpush1.bf16.msra.mxu0 %v467
    %792 = vmatprep.subr.bf16.mxu0 %v464
    %793 = vmatpush1.bf16.msra.mxu0 %v463
    %794 = vmatprep.subr.bf16.mxu0 %v460
    %795 = vmatpush1.bf16.msra.mxu0 %v459
    %796 = vmatprep.subr.bf16.mxu0 %v456
    %797 = vmatpush1.bf16.msra.mxu0 %v455
    %798 = vmatprep.subr.bf16.mxu0 %v452
    %799 = vmatpush1.bf16.msra.mxu0 %v451
    %800 = vmatprep.subr.bf16.mxu0 0
    %801 = vmatpush2.bf16.msra.mxu0 0
    %802 = vmatprep.subr.bf16.mxu0 0
    %803 = vmatpush2.bf16.msra.mxu0 0
    %804 = vmatprep.subr.bf16.mxu0 0
    %805 = vmatpush2.bf16.msra.mxu0 0
    %806 = vmatprep.subr.bf16.mxu0 0
    %807 = vmatpush2.bf16.msra.mxu0 0
    %808 = vmatprep.subr.bf16.mxu0 0
    %809 = vmatpush2.bf16.msra.mxu0 0
    %810 = vmatprep.subr.bf16.mxu0 0
    %811 = vmatpush2.bf16.msra.mxu0 0
    %812 = vmatprep.subr.bf16.mxu0 0
    %813 = vmatpush2.bf16.msra.mxu0 0
    %814 = vmatprep.subr.bf16.mxu0 0
    %815 = vmatpush2.bf16.msra.mxu0 0
    %816 = vmatprep.mubr.bf16.mxu0 0
    %817 = vmatmul.mubr.bf16.gmra.mxu0 %v742
    %v818 = vpop.f32.mrf.mxu0
    %v819 = vadd.f32 0.0, %v818
    %v820 = vpop.f32.mrf.mxu0
    %v821 = vadd.f32 0.0, %v820
    %v822 = vpop.f32.mrf.mxu0
    %v823 = vpop.f32.mrf.mxu0
    %824 = vdwg.mxu0
    %v825 = vadd.f32 %v738, %v778
    %v826 = vadd.f32 %v739, %v780
    %v827 = vadd.f32 %v740, %v819
    %v828 = vadd.f32 %v741, %v821
    %v829 = vxor.u32 %v825, 2147483648
    %v830 = vxor.u32 %v826, 2147483648
    %v831 = vxor.u32 %v827, 2147483648
    %v832 = vmul.f32 %v829, 1.442695
    %v833 = vpow.pop %v832
    %v834 = vmul.f32 %v830, 1.442695
    %v835 = vpow.pop %v834
    %v836 = vmul.f32 %v831, 1.442695
    %v837 = vpow.pop %v836
    %v838 = vadd.f32 %v833, 1.0
    %v839 = vadd.f32 %v835, 1.0
    %v840 = vadd.f32 %v837, 1.0
    %v841 = vrcp.pop %v838
    %v842 = vmul.f32 1.0, %v841
    %v843 = vrcp.pop %v839
    %v844 = vmul.f32 1.0, %v843
    %v845 = vrcp.pop %v840
    %v846 = vmul.f32 1.0, %v845
    %v847 = vtanh.pop %v828
    %v848 = vmul.f32 %v844, %v735
    %v849 = vmul.f32 %v842, %v847
    %v850 = vadd.f32 %v848, %v849
    %v851 = vtanh.pop %v850
    %v852 = vmul.f32 %v846, %v851
    %v853 = vld [vmem:[%s158] sm:$0xff]
    %v854 = vld [vmem:[%s158 + $0x8] sm:$0xff]
    %v855 = vld [vmem:[%s158 + $0x10] sm:$0xff]
    %v856 = vld [vmem:[%s158 + $0x18] sm:$0xff]
    %v857 = vpack.c.bf16 %v852, %v852
    %858 = vmatprep.subr.bf16.mxu0 %v478
    %859 = vmatpush1.bf16.msra.mxu0 %v477
    %860 = vmatprep.subr.bf16.mxu0 %v474
    %861 = vmatpush1.bf16.msra.mxu0 %v473
    %862 = vmatprep.subr.bf16.mxu0 %v470
    %863 = vmatpush1.bf16.msra.mxu0 %v469
    %864 = vmatprep.subr.bf16.mxu0 %v466
    %865 = vmatpush1.bf16.msra.mxu0 %v465
    %866 = vmatprep.subr.bf16.mxu0 %v462
    %867 = vmatpush1.bf16.msra.mxu0 %v461
    %868 = vmatprep.subr.bf16.mxu0 %v458
    %869 = vmatpush1.bf16.msra.mxu0 %v457
    %870 = vmatprep.subr.bf16.mxu0 %v454
    %871 = vmatpush1.bf16.msra.mxu0 %v453
    %872 = vmatprep.subr.bf16.mxu0 %v450
    %873 = vmatpush1.bf16.msra.mxu0 %v449
    %874 = vmatprep.subr.bf16.mxu0 0
    %875 = vmatpush2.bf16.msra.mxu0 0
    %876 = vmatprep.subr.bf16.mxu0 0
    %877 = vmatpush2.bf16.msra.mxu0 0
    %878 = vmatprep.subr.bf16.mxu0 0
    %879 = vmatpush2.bf16.msra.mxu0 0
    %880 = vmatprep.subr.bf16.mxu0 0
    %881 = vmatpush2.bf16.msra.mxu0 0
    %882 = vmatprep.subr.bf16.mxu0 0
    %883 = vmatpush2.bf16.msra.mxu0 0
    %884 = vmatprep.subr.bf16.mxu0 0
    %885 = vmatpush2.bf16.msra.mxu0 0
    %886 = vmatprep.subr.bf16.mxu0 0
    %887 = vmatpush2.bf16.msra.mxu0 0
    %888 = vmatprep.subr.bf16.mxu0 0
    %889 = vmatpush2.bf16.msra.mxu0 0
    %890 = vmatprep.mubr.bf16.mxu0 0
    %891 = vmatmul.mubr.bf16.gmra.mxu0 %v857
    %v892 = vpop.f32.mrf.mxu0
    %v893 = vadd.f32 0.0, %v892
    %v894 = vpop.f32.mrf.mxu0
    %v895 = vadd.f32 0.0, %v894
    %v896 = vpop.f32.mrf.mxu0
    %v897 = vpop.f32.mrf.mxu0
    %898 = vdwg.mxu0
    %899 = vmatprep.subr.bf16.mxu0 %v480
    %900 = vmatpush1.bf16.msra.mxu0 %v479
    %901 = vmatprep.subr.bf16.mxu0 %v476
    %902 = vmatpush1.bf16.msra.mxu0 %v475
    %903 = vmatprep.subr.bf16.mxu0 %v472
    %904 = vmatpush1.bf16.msra.mxu0 %v471
    %905 = vmatprep.subr.bf16.mxu0 %v468
    %906 = vmatpush1.bf16.msra.mxu0 %v467
    %907 = vmatprep.subr.bf16.mxu0 %v464
    %908 = vmatpush1.bf16.msra.mxu0 %v463
    %909 = vmatprep.subr.bf16.mxu0 %v460
    %910 = vmatpush1.bf16.msra.mxu0 %v459
    %911 = vmatprep.subr.bf16.mxu0 %v456
    %912 = vmatpush1.bf16.msra.mxu0 %v455
    %913 = vmatprep.subr.bf16.mxu0 %v452
    %914 = vmatpush1.bf16.msra.mxu0 %v451
    %915 = vmatprep.subr.bf16.mxu0 0
    %916 = vmatpush2.bf16.msra.mxu0 0
    %917 = vmatprep.subr.bf16.mxu0 0
    %918 = vmatpush2.bf16.msra.mxu0 0
    %919 = vmatprep.subr.bf16.mxu0 0
    %920 = vmatpush2.bf16.msra.mxu0 0
    %921 = vmatprep.subr.bf16.mxu0 0
    %922 = vmatpush2.bf16.msra.mxu0 0
    %923 = vmatprep.subr.bf16.mxu0 0
    %924 = vmatpush2.bf16.msra.mxu0 0
    %925 = vmatprep.subr.bf16.mxu0 0
    %926 = vmatpush2.bf16.msra.mxu0 0
    %927 = vmatprep.subr.bf16.mxu0 0
    %928 = vmatpush2.bf16.msra.mxu0 0
    %929 = vmatprep.subr.bf16.mxu0 0
    %930 = vmatpush2.bf16.msra.mxu0 0
    %931 = vmatprep.mubr.bf16.mxu0 0
    %932 = vmatmul.mubr.bf16.gmra.mxu0 %v857
    %v933 = vpop.f32.mrf.mxu0
    %v934 = vadd.f32 0.0, %v933
    %v935 = vpop.f32.mrf.mxu0
    %v936 = vadd.f32 0.0, %v935
    %v937 = vpop.f32.mrf.mxu0
    %v938 = vpop.f32.mrf.mxu0
    %939 = vdwg.mxu0
    %v940 = vadd.f32 %v853, %v893
    %v941 = vadd.f32 %v854, %v895
    %v942 = vadd.f32 %v855, %v934
    %v943 = vadd.f32 %v856, %v936
    %v944 = vxor.u32 %v940, 2147483648
    %v945 = vxor.u32 %v941, 2147483648
    %v946 = vxor.u32 %v942, 2147483648
    %v947 = vmul.f32 %v944, 1.442695
    %v948 = vpow.pop %v947
    %v949 = vmul.f32 %v945, 1.442695
    %v950 = vpow.pop %v949
    %v951 = vmul.f32 %v946, 1.442695
    %v952 = vpow.pop %v951
    %v953 = vadd.f32 %v948, 1.0
    %v954 = vadd.f32 %v950, 1.0
    %v955 = vadd.f32 %v952, 1.0
    %v956 = vrcp.pop %v953
    %v957 = vmul.f32 1.0, %v956
    %v958 = vrcp.pop %v954
    %v959 = vmul.f32 1.0, %v958
    %v960 = vrcp.pop %v955
    %v961 = vmul.f32 1.0, %v960
    %v962 = vtanh.pop %v943
    %v963 = vmul.f32 %v959, %v850
    %v964 = vmul.f32 %v957, %v962
    %v965 = vadd.f32 %v963, %v964
    %v966 = vtanh.pop %v965
    %v967 = vmul.f32 %v961, %v966
    %v968 = vld [vmem:[%s171] sm:$0xff]
    %v969 = vld [vmem:[%s171 + $0x8] sm:$0xff]
    %v970 = vld [vmem:[%s171 + $0x10] sm:$0xff]
    %v971 = vld [vmem:[%s171 + $0x18] sm:$0xff]
    %v972 = vpack.c.bf16 %v967, %v967
    %973 = vmatprep.subr.bf16.mxu0 %v478
    %974 = vmatpush1.bf16.msra.mxu0 %v477
    %975 = vmatprep.subr.bf16.mxu0 %v474
    %976 = vmatpush1.bf16.msra.mxu0 %v473
    %977 = vmatprep.subr.bf16.mxu0 %v470
    %978 = vmatpush1.bf16.msra.mxu0 %v469
    %979 = vmatprep.subr.bf16.mxu0 %v466
    %980 = vmatpush1.bf16.msra.mxu0 %v465
    %981 = vmatprep.subr.bf16.mxu0 %v462
    %982 = vmatpush1.bf16.msra.mxu0 %v461
    %983 = vmatprep.subr.bf16.mxu0 %v458
    %984 = vmatpush1.bf16.msra.mxu0 %v457
    %985 = vmatprep.subr.bf16.mxu0 %v454
    %986 = vmatpush1.bf16.msra.mxu0 %v453
    %987 = vmatprep.subr.bf16.mxu0 %v450
    %988 = vmatpush1.bf16.msra.mxu0 %v449
    %989 = vmatprep.subr.bf16.mxu0 0
    %990 = vmatpush2.bf16.msra.mxu0 0
    %991 = vmatprep.subr.bf16.mxu0 0
    %992 = vmatpush2.bf16.msra.mxu0 0
    %993 = vmatprep.subr.bf16.mxu0 0
    %994 = vmatpush2.bf16.msra.mxu0 0
    %995 = vmatprep.subr.bf16.mxu0 0
    %996 = vmatpush2.bf16.msra.mxu0 0
    %997 = vmatprep.subr.bf16.mxu0 0
    %998 = vmatpush2.bf16.msra.mxu0 0
    %999 = vmatprep.subr.bf16.mxu0 0
    %1000 = vmatpush2.bf16.msra.mxu0 0
    %1001 = vmatprep.subr.bf16.mxu0 0
    %1002 = vmatpush2.bf16.msra.mxu0 0
    %1003 = vmatprep.subr.bf16.mxu0 0
    %1004 = vmatpush2.bf16.msra.mxu0 0
    %1005 = vmatprep.mubr.bf16.mxu0 0
    %1006 = vmatmul.mubr.bf16.gmra.mxu0 %v972
    %v1007 = vpop.f32.mrf.mxu0
    %v1008 = vadd.f32 0.0, %v1007
    %v1009 = vpop.f32.mrf.mxu0
    %v1010 = vadd.f32 0.0, %v1009
    %v1011 = vpop.f32.mrf.mxu0
    %v1012 = vpop.f32.mrf.mxu0
    %1013 = vdwg.mxu0
    %1014 = vmatprep.subr.bf16.mxu0 %v480
    %1015 = vmatpush1.bf16.msra.mxu0 %v479
    %1016 = vmatprep.subr.bf16.mxu0 %v476
    %1017 = vmatpush1.bf16.msra.mxu0 %v475
    %1018 = vmatprep.subr.bf16.mxu0 %v472
    %1019 = vmatpush1.bf16.msra.mxu0 %v471
    %1020 = vmatprep.subr.bf16.mxu0 %v468
    %1021 = vmatpush1.bf16.msra.mxu0 %v467
    %1022 = vmatprep.subr.bf16.mxu0 %v464
    %1023 = vmatpush1.bf16.msra.mxu0 %v463
    %1024 = vmatprep.subr.bf16.mxu0 %v460
    %1025 = vmatpush1.bf16.msra.mxu0 %v459
    %1026 = vmatprep.subr.bf16.mxu0 %v456
    %1027 = vmatpush1.bf16.msra.mxu0 %v455
    %1028 = vmatprep.subr.bf16.mxu0 %v452
    %1029 = vmatpush1.bf16.msra.mxu0 %v451
    %1030 = vmatprep.subr.bf16.mxu0 0
    %1031 = vmatpush2.bf16.msra.mxu0 0
    %1032 = vmatprep.subr.bf16.mxu0 0
    %1033 = vmatpush2.bf16.msra.mxu0 0
    %1034 = vmatprep.subr.bf16.mxu0 0
    %1035 = vmatpush2.bf16.msra.mxu0 0
    %1036 = vmatprep.subr.bf16.mxu0 0
    %1037 = vmatpush2.bf16.msra.mxu0 0
    %1038 = vmatprep.subr.bf16.mxu0 0
    %1039 = vmatpush2.bf16.msra.mxu0 0
    %1040 = vmatprep.subr.bf16.mxu0 0
    %1041 = vmatpush2.bf16.msra.mxu0 0
    %1042 = vmatprep.subr.bf16.mxu0 0
    %1043 = vmatpush2.bf16.msra.mxu0 0
    %1044 = vmatprep.subr.bf16.mxu0 0
    %1045 = vmatpush2.bf16.msra.mxu0 0
    %1046 = vmatprep.mubr.bf16.mxu0 0
    %1047 = vmatmul.mubr.bf16.gmra.mxu0 %v972
    %v1048 = vpop.f32.mrf.mxu0
    %v1049 = vadd.f32 0.0, %v1048
    %v1050 = vpop.f32.mrf.mxu0
    %v1051 = vadd.f32 0.0, %v1050
    %v1052 = vpop.f32.mrf.mxu0
    %v1053 = vpop.f32.mrf.mxu0
    %1054 = vdwg.mxu0
    %v1055 = vadd.f32 %v968, %v1008
    %v1056 = vadd.f32 %v969, %v1010
    %v1057 = vadd.f32 %v970, %v1049
    %v1058 = vadd.f32 %v971, %v1051
    %v1059 = vxor.u32 %v1055, 2147483648
    %v1060 = vxor.u32 %v1056, 2147483648
    %v1061 = vxor.u32 %v1057, 2147483648
    %v1062 = vmul.f32 %v1059, 1.442695
    %v1063 = vpow.pop %v1062
    %v1064 = vmul.f32 %v1060, 1.442695
    %v1065 = vpow.pop %v1064
    %v1066 = vmul.f32 %v1061, 1.442695
    %v1067 = vpow.pop %v1066
    %v1068 = vadd.f32 %v1063, 1.0
    %v1069 = vadd.f32 %v1065, 1.0
    %v1070 = vadd.f32 %v1067, 1.0
    %v1071 = vrcp.pop %v1068
    %v1072 = vmul.f32 1.0, %v1071
    %v1073 = vrcp.pop %v1069
    %v1074 = vmul.f32 1.0, %v1073
    %v1075 = vrcp.pop %v1070
    %v1076 = vmul.f32 1.0, %v1075
    %v1077 = vtanh.pop %v1058
    %v1078 = vmul.f32 %v1074, %v965
    %v1079 = vmul.f32 %v1072, %v1077
    %v1080 = vadd.f32 %v1078, %v1079
    %v1081 = vtanh.pop %v1080
    %v1082 = vmul.f32 %v1076, %v1081
    %v1083 = vld [vmem:[%s184] sm:$0xff]
    %v1084 = vld [vmem:[%s184 + $0x8] sm:$0xff]
    %v1085 = vld [vmem:[%s184 + $0x10] sm:$0xff]
    %v1086 = vld [vmem:[%s184 + $0x18] sm:$0xff]
    %v1087 = vpack.c.bf16 %v1082, %v1082
    %1088 = vmatprep.subr.bf16.mxu0 %v478
    %1089 = vmatpush1.bf16.msra.mxu0 %v477
    %1090 = vmatprep.subr.bf16.mxu0 %v474
    %1091 = vmatpush1.bf16.msra.mxu0 %v473
    %1092 = vmatprep.subr.bf16.mxu0 %v470
    %1093 = vmatpush1.bf16.msra.mxu0 %v469
    %1094 = vmatprep.subr.bf16.mxu0 %v466
    %1095 = vmatpush1.bf16.msra.mxu0 %v465
    %1096 = vmatprep.subr.bf16.mxu0 %v462
    %1097 = vmatpush1.bf16.msra.mxu0 %v461
    %1098 = vmatprep.subr.bf16.mxu0 %v458
    %1099 = vmatpush1.bf16.msra.mxu0 %v457
    %1100 = vmatprep.subr.bf16.mxu0 %v454
    %1101 = vmatpush1.bf16.msra.mxu0 %v453
    %1102 = vmatprep.subr.bf16.mxu0 %v450
    %1103 = vmatpush1.bf16.msra.mxu0 %v449
    %1104 = vmatprep.subr.bf16.mxu0 0
    %1105 = vmatpush2.bf16.msra.mxu0 0
    %1106 = vmatprep.subr.bf16.mxu0 0
    %1107 = vmatpush2.bf16.msra.mxu0 0
    %1108 = vmatprep.subr.bf16.mxu0 0
    %1109 = vmatpush2.bf16.msra.mxu0 0
    %1110 = vmatprep.subr.bf16.mxu0 0
    %1111 = vmatpush2.bf16.msra.mxu0 0
    %1112 = vmatprep.subr.bf16.mxu0 0
    %1113 = vmatpush2.bf16.msra.mxu0 0
    %1114 = vmatprep.subr.bf16.mxu0 0
    %1115 = vmatpush2.bf16.msra.mxu0 0
    %1116 = vmatprep.subr.bf16.mxu0 0
    %1117 = vmatpush2.bf16.msra.mxu0 0
    %1118 = vmatprep.subr.bf16.mxu0 0
    %1119 = vmatpush2.bf16.msra.mxu0 0
    %1120 = vmatprep.mubr.bf16.mxu0 0
    %1121 = vmatmul.mubr.bf16.gmra.mxu0 %v1087
    %v1122 = vpop.f32.mrf.mxu0
    %v1123 = vadd.f32 0.0, %v1122
    %v1124 = vpop.f32.mrf.mxu0
    %v1125 = vadd.f32 0.0, %v1124
    %v1126 = vpop.f32.mrf.mxu0
    %v1127 = vpop.f32.mrf.mxu0
    %1128 = vdwg.mxu0
    %1129 = vmatprep.subr.bf16.mxu0 %v480
    %1130 = vmatpush1.bf16.msra.mxu0 %v479
    %1131 = vmatprep.subr.bf16.mxu0 %v476
    %1132 = vmatpush1.bf16.msra.mxu0 %v475
    %1133 = vmatprep.subr.bf16.mxu0 %v472
    %1134 = vmatpush1.bf16.msra.mxu0 %v471
    %1135 = vmatprep.subr.bf16.mxu0 %v468
    %1136 = vmatpush1.bf16.msra.mxu0 %v467
    %1137 = vmatprep.subr.bf16.mxu0 %v464
    %1138 = vmatpush1.bf16.msra.mxu0 %v463
    %1139 = vmatprep.subr.bf16.mxu0 %v460
    %1140 = vmatpush1.bf16.msra.mxu0 %v459
    %1141 = vmatprep.subr.bf16.mxu0 %v456
    %1142 = vmatpush1.bf16.msra.mxu0 %v455
    %1143 = vmatprep.subr.bf16.mxu0 %v452
    %1144 = vmatpush1.bf16.msra.mxu0 %v451
    %1145 = vmatprep.subr.bf16.mxu0 0
    %1146 = vmatpush2.bf16.msra.mxu0 0
    %1147 = vmatprep.subr.bf16.mxu0 0
    %1148 = vmatpush2.bf16.msra.mxu0 0
    %1149 = vmatprep.subr.bf16.mxu0 0
    %1150 = vmatpush2.bf16.msra.mxu0 0
    %1151 = vmatprep.subr.bf16.mxu0 0
    %1152 = vmatpush2.bf16.msra.mxu0 0
    %1153 = vmatprep.subr.bf16.mxu0 0
    %1154 = vmatpush2.bf16.msra.mxu0 0
    %1155 = vmatprep.subr.bf16.mxu0 0
    %1156 = vmatpush2.bf16.msra.mxu0 0
    %1157 = vmatprep.subr.bf16.mxu0 0
    %1158 = vmatpush2.bf16.msra.mxu0 0
    %1159 = vmatprep.subr.bf16.mxu0 0
    %1160 = vmatpush2.bf16.msra.mxu0 0
    %1161 = vmatprep.mubr.bf16.mxu0 0
    %1162 = vmatmul.mubr.bf16.gmra.mxu0 %v1087
    %v1163 = vpop.f32.mrf.mxu0
    %v1164 = vadd.f32 0.0, %v1163
    %v1165 = vpop.f32.mrf.mxu0
    %v1166 = vadd.f32 0.0, %v1165
    %v1167 = vpop.f32.mrf.mxu0
    %v1168 = vpop.f32.mrf.mxu0
    %1169 = vdwg.mxu0
    %v1170 = vadd.f32 %v1083, %v1123
    %v1171 = vadd.f32 %v1084, %v1125
    %v1172 = vadd.f32 %v1085, %v1164
    %v1173 = vadd.f32 %v1086, %v1166
    %v1174 = vxor.u32 %v1170, 2147483648
    %v1175 = vxor.u32 %v1171, 2147483648
    %v1176 = vxor.u32 %v1172, 2147483648
    %v1177 = vmul.f32 %v1174, 1.442695
    %v1178 = vpow.pop %v1177
    %v1179 = vmul.f32 %v1175, 1.442695
    %v1180 = vpow.pop %v1179
    %v1181 = vmul.f32 %v1176, 1.442695
    %v1182 = vpow.pop %v1181
    %v1183 = vadd.f32 %v1178, 1.0
    %v1184 = vadd.f32 %v1180, 1.0
    %v1185 = vadd.f32 %v1182, 1.0
    %v1186 = vrcp.pop %v1183
    %v1187 = vmul.f32 1.0, %v1186
    %v1188 = vrcp.pop %v1184
    %v1189 = vmul.f32 1.0, %v1188
    %v1190 = vrcp.pop %v1185
    %v1191 = vmul.f32 1.0, %v1190
    %v1192 = vtanh.pop %v1173
    %v1193 = vmul.f32 %v1189, %v1080
    %v1194 = vmul.f32 %v1187, %v1192
    %v1195 = vadd.f32 %v1193, %v1194
    %v1196 = vtanh.pop %v1195
    %v1197 = vmul.f32 %v1191, %v1196
    %v1198 = vld [vmem:[%s197] sm:$0xff]
    %v1199 = vld [vmem:[%s197 + $0x8] sm:$0xff]
    %v1200 = vld [vmem:[%s197 + $0x10] sm:$0xff]
    %v1201 = vld [vmem:[%s197 + $0x18] sm:$0xff]
    %v1202 = vpack.c.bf16 %v1197, %v1197
    %1203 = vmatprep.subr.bf16.mxu0 %v478
    %1204 = vmatpush1.bf16.msra.mxu0 %v477
    %1205 = vmatprep.subr.bf16.mxu0 %v474
    %1206 = vmatpush1.bf16.msra.mxu0 %v473
    %1207 = vmatprep.subr.bf16.mxu0 %v470
    %1208 = vmatpush1.bf16.msra.mxu0 %v469
    %1209 = vmatprep.subr.bf16.mxu0 %v466
    %1210 = vmatpush1.bf16.msra.mxu0 %v465
    %1211 = vmatprep.subr.bf16.mxu0 %v462
    %1212 = vmatpush1.bf16.msra.mxu0 %v461
    %1213 = vmatprep.subr.bf16.mxu0 %v458
    %1214 = vmatpush1.bf16.msra.mxu0 %v457
    %1215 = vmatprep.subr.bf16.mxu0 %v454
    %1216 = vmatpush1.bf16.msra.mxu0 %v453
    %1217 = vmatprep.subr.bf16.mxu0 %v450
    %1218 = vmatpush1.bf16.msra.mxu0 %v449
    %1219 = vmatprep.subr.bf16.mxu0 0
    %1220 = vmatpush2.bf16.msra.mxu0 0
    %1221 = vmatprep.subr.bf16.mxu0 0
    %1222 = vmatpush2.bf16.msra.mxu0 0
    %1223 = vmatprep.subr.bf16.mxu0 0
    %1224 = vmatpush2.bf16.msra.mxu0 0
    %1225 = vmatprep.subr.bf16.mxu0 0
    %1226 = vmatpush2.bf16.msra.mxu0 0
    %1227 = vmatprep.subr.bf16.mxu0 0
    %1228 = vmatpush2.bf16.msra.mxu0 0
    %1229 = vmatprep.subr.bf16.mxu0 0
    %1230 = vmatpush2.bf16.msra.mxu0 0
    %1231 = vmatprep.subr.bf16.mxu0 0
    %1232 = vmatpush2.bf16.msra.mxu0 0
    %1233 = vmatprep.subr.bf16.mxu0 0
    %1234 = vmatpush2.bf16.msra.mxu0 0
    %1235 = vmatprep.mubr.bf16.mxu0 0
    %1236 = vmatmul.mubr.bf16.gmra.mxu0 %v1202
    %v1237 = vpop.f32.mrf.mxu0
    %v1238 = vadd.f32 0.0, %v1237
    %v1239 = vpop.f32.mrf.mxu0
    %v1240 = vadd.f32 0.0, %v1239
    %v1241 = vpop.f32.mrf.mxu0
    %v1242 = vpop.f32.mrf.mxu0
    %1243 = vdwg.mxu0
    %1244 = vmatprep.subr.bf16.mxu0 %v480
    %1245 = vmatpush1.bf16.msra.mxu0 %v479
    %1246 = vmatprep.subr.bf16.mxu0 %v476
    %1247 = vmatpush1.bf16.msra.mxu0 %v475
    %1248 = vmatprep.subr.bf16.mxu0 %v472
    %1249 = vmatpush1.bf16.msra.mxu0 %v471
    %1250 = vmatprep.subr.bf16.mxu0 %v468
    %1251 = vmatpush1.bf16.msra.mxu0 %v467
    %1252 = vmatprep.subr.bf16.mxu0 %v464
    %1253 = vmatpush1.bf16.msra.mxu0 %v463
    %1254 = vmatprep.subr.bf16.mxu0 %v460
    %1255 = vmatpush1.bf16.msra.mxu0 %v459
    %1256 = vmatprep.subr.bf16.mxu0 %v456
    %1257 = vmatpush1.bf16.msra.mxu0 %v455
    %1258 = vmatprep.subr.bf16.mxu0 %v452
    %1259 = vmatpush1.bf16.msra.mxu0 %v451
    %1260 = vmatprep.subr.bf16.mxu0 0
    %1261 = vmatpush2.bf16.msra.mxu0 0
    %1262 = vmatprep.subr.bf16.mxu0 0
    %1263 = vmatpush2.bf16.msra.mxu0 0
    %1264 = vmatprep.subr.bf16.mxu0 0
    %1265 = vmatpush2.bf16.msra.mxu0 0
    %1266 = vmatprep.subr.bf16.mxu0 0
    %1267 = vmatpush2.bf16.msra.mxu0 0
    %1268 = vmatprep.subr.bf16.mxu0 0
    %1269 = vmatpush2.bf16.msra.mxu0 0
    %1270 = vmatprep.subr.bf16.mxu0 0
    %1271 = vmatpush2.bf16.msra.mxu0 0
    %1272 = vmatprep.subr.bf16.mxu0 0
    %1273 = vmatpush2.bf16.msra.mxu0 0
    %1274 = vmatprep.subr.bf16.mxu0 0
    %1275 = vmatpush2.bf16.msra.mxu0 0
    %1276 = vmatprep.mubr.bf16.mxu0 0
    %1277 = vmatmul.mubr.bf16.gmra.mxu0 %v1202
    %v1278 = vpop.f32.mrf.mxu0
    %v1279 = vadd.f32 0.0, %v1278
    %v1280 = vpop.f32.mrf.mxu0
    %v1281 = vadd.f32 0.0, %v1280
    %v1282 = vpop.f32.mrf.mxu0
    %v1283 = vpop.f32.mrf.mxu0
    %1284 = vdwg.mxu0
    %v1285 = vadd.f32 %v1198, %v1238
    %v1286 = vadd.f32 %v1199, %v1240
    %v1287 = vadd.f32 %v1200, %v1279
    %v1288 = vadd.f32 %v1201, %v1281
    %v1289 = vxor.u32 %v1285, 2147483648
    %v1290 = vxor.u32 %v1286, 2147483648
    %v1291 = vxor.u32 %v1287, 2147483648
    %v1292 = vmul.f32 %v1289, 1.442695
    %v1293 = vpow.pop %v1292
    %v1294 = vmul.f32 %v1290, 1.442695
    %v1295 = vpow.pop %v1294
    %v1296 = vmul.f32 %v1291, 1.442695
    %v1297 = vpow.pop %v1296
    %v1298 = vadd.f32 %v1293, 1.0
    %v1299 = vadd.f32 %v1295, 1.0
    %v1300 = vadd.f32 %v1297, 1.0
    %v1301 = vrcp.pop %v1298
    %v1302 = vmul.f32 1.0, %v1301
    %v1303 = vrcp.pop %v1299
    %v1304 = vmul.f32 1.0, %v1303
    %v1305 = vrcp.pop %v1300
    %v1306 = vmul.f32 1.0, %v1305
    %v1307 = vtanh.pop %v1288
    %v1308 = vmul.f32 %v1304, %v1195
    %v1309 = vmul.f32 %v1302, %v1307
    %v1310 = vadd.f32 %v1308, %v1309
    %v1311 = vtanh.pop %v1310
    %v1312 = vmul.f32 %v1306, %v1311
    %v1313 = vld [vmem:[%s210] sm:$0xff]
    %v1314 = vld [vmem:[%s210 + $0x8] sm:$0xff]
    %v1315 = vld [vmem:[%s210 + $0x10] sm:$0xff]
    %v1316 = vld [vmem:[%s210 + $0x18] sm:$0xff]
    %v1317 = vpack.c.bf16 %v1312, %v1312
    %1318 = vmatprep.subr.bf16.mxu0 %v478
    %1319 = vmatpush1.bf16.msra.mxu0 %v477
    %1320 = vmatprep.subr.bf16.mxu0 %v474
    %1321 = vmatpush1.bf16.msra.mxu0 %v473
    %1322 = vmatprep.subr.bf16.mxu0 %v470
    %1323 = vmatpush1.bf16.msra.mxu0 %v469
    %1324 = vmatprep.subr.bf16.mxu0 %v466
    %1325 = vmatpush1.bf16.msra.mxu0 %v465
    %1326 = vmatprep.subr.bf16.mxu0 %v462
    %1327 = vmatpush1.bf16.msra.mxu0 %v461
    %1328 = vmatprep.subr.bf16.mxu0 %v458
    %1329 = vmatpush1.bf16.msra.mxu0 %v457
    %1330 = vmatprep.subr.bf16.mxu0 %v454
    %1331 = vmatpush1.bf16.msra.mxu0 %v453
    %1332 = vmatprep.subr.bf16.mxu0 %v450
    %1333 = vmatpush1.bf16.msra.mxu0 %v449
    %1334 = vmatprep.subr.bf16.mxu0 0
    %1335 = vmatpush2.bf16.msra.mxu0 0
    %1336 = vmatprep.subr.bf16.mxu0 0
    %1337 = vmatpush2.bf16.msra.mxu0 0
    %1338 = vmatprep.subr.bf16.mxu0 0
    %1339 = vmatpush2.bf16.msra.mxu0 0
    %1340 = vmatprep.subr.bf16.mxu0 0
    %1341 = vmatpush2.bf16.msra.mxu0 0
    %1342 = vmatprep.subr.bf16.mxu0 0
    %1343 = vmatpush2.bf16.msra.mxu0 0
    %1344 = vmatprep.subr.bf16.mxu0 0
    %1345 = vmatpush2.bf16.msra.mxu0 0
    %1346 = vmatprep.subr.bf16.mxu0 0
    %1347 = vmatpush2.bf16.msra.mxu0 0
    %1348 = vmatprep.subr.bf16.mxu0 0
    %1349 = vmatpush2.bf16.msra.mxu0 0
    %1350 = vmatprep.mubr.bf16.mxu0 0
    %1351 = vmatmul.mubr.bf16.gmra.mxu0 %v1317
    %v1352 = vpop.f32.mrf.mxu0
    %v1353 = vadd.f32 0.0, %v1352
    %v1354 = vpop.f32.mrf.mxu0
    %v1355 = vadd.f32 0.0, %v1354
    %v1356 = vpop.f32.mrf.mxu0
    %v1357 = vpop.f32.mrf.mxu0
    %1358 = vdwg.mxu0
    %1359 = vmatprep.subr.bf16.mxu0 %v480
    %1360 = vmatpush1.bf16.msra.mxu0 %v479
    %1361 = vmatprep.subr.bf16.mxu0 %v476
    %1362 = vmatpush1.bf16.msra.mxu0 %v475
    %1363 = vmatprep.subr.bf16.mxu0 %v472
    %1364 = vmatpush1.bf16.msra.mxu0 %v471
    %1365 = vmatprep.subr.bf16.mxu0 %v468
    %1366 = vmatpush1.bf16.msra.mxu0 %v467
    %1367 = vmatprep.subr.bf16.mxu0 %v464
    %1368 = vmatpush1.bf16.msra.mxu0 %v463
    %1369 = vmatprep.subr.bf16.mxu0 %v460
    %1370 = vmatpush1.bf16.msra.mxu0 %v459
    %1371 = vmatprep.subr.bf16.mxu0 %v456
    %1372 = vmatpush1.bf16.msra.mxu0 %v455
    %1373 = vmatprep.subr.bf16.mxu0 %v452
    %1374 = vmatpush1.bf16.msra.mxu0 %v451
    %1375 = vmatprep.subr.bf16.mxu0 0
    %1376 = vmatpush2.bf16.msra.mxu0 0
    %1377 = vmatprep.subr.bf16.mxu0 0
    %1378 = vmatpush2.bf16.msra.mxu0 0
    %1379 = vmatprep.subr.bf16.mxu0 0
    %1380 = vmatpush2.bf16.msra.mxu0 0
    %1381 = vmatprep.subr.bf16.mxu0 0
    %1382 = vmatpush2.bf16.msra.mxu0 0
    %1383 = vmatprep.subr.bf16.mxu0 0
    %1384 = vmatpush2.bf16.msra.mxu0 0
    %1385 = vmatprep.subr.bf16.mxu0 0
    %1386 = vmatpush2.bf16.msra.mxu0 0
    %1387 = vmatprep.subr.bf16.mxu0 0
    %1388 = vmatpush2.bf16.msra.mxu0 0
    %1389 = vmatprep.subr.bf16.mxu0 0
    %1390 = vmatpush2.bf16.msra.mxu0 0
    %1391 = vmatprep.mubr.bf16.mxu0 0
    %1392 = vmatmul.mubr.bf16.gmra.mxu0 %v1317
    %v1393 = vpop.f32.mrf.mxu0
    %v1394 = vadd.f32 0.0, %v1393
    %v1395 = vpop.f32.mrf.mxu0
    %v1396 = vadd.f32 0.0, %v1395
    %v1397 = vpop.f32.mrf.mxu0
    %v1398 = vpop.f32.mrf.mxu0
    %1399 = vdwg.mxu0
    %v1400 = vadd.f32 %v1313, %v1353
    %v1401 = vadd.f32 %v1314, %v1355
    %v1402 = vadd.f32 %v1315, %v1394
    %v1403 = vadd.f32 %v1316, %v1396
    %v1404 = vxor.u32 %v1400, 2147483648
    %v1405 = vxor.u32 %v1401, 2147483648
    %v1406 = vxor.u32 %v1402, 2147483648
    %v1407 = vmul.f32 %v1404, 1.442695
    %v1408 = vpow.pop %v1407
    %v1409 = vmul.f32 %v1405, 1.442695
    %v1410 = vpow.pop %v1409
    %v1411 = vmul.f32 %v1406, 1.442695
    %v1412 = vpow.pop %v1411
    %v1413 = vadd.f32 %v1408, 1.0
    %v1414 = vadd.f32 %v1410, 1.0
    %v1415 = vadd.f32 %v1412, 1.0
    %v1416 = vrcp.pop %v1413
    %v1417 = vmul.f32 1.0, %v1416
    %v1418 = vrcp.pop %v1414
    %v1419 = vmul.f32 1.0, %v1418
    %v1420 = vrcp.pop %v1415
    %v1421 = vmul.f32 1.0, %v1420
    %v1422 = vtanh.pop %v1403
    %v1423 = vmul.f32 %v1419, %v1310
    %v1424 = vmul.f32 %v1417, %v1422
    %v1425 = vadd.f32 %v1423, %v1424
    %v1426 = vtanh.pop %v1425
    %v1427 = vmul.f32 %v1421, %v1426
    %v1428 = vld [vmem:[#allocation10] sm:$0xff]
    %v1429 = vld [vmem:[#allocation10 + $0x8] sm:$0xff]
    %v1430 = vld [vmem:[#allocation10 + $0x10] sm:$0xff]
    %v1431 = vld [vmem:[#allocation10 + $0x18] sm:$0xff]
    %v1432 = vld [vmem:[#allocation10 + $0x20] sm:$0xff]
    %v1433 = vld [vmem:[#allocation10 + $0x28] sm:$0xff]
    %v1434 = vld [vmem:[#allocation10 + $0x30] sm:$0xff]
    %v1435 = vld [vmem:[#allocation10 + $0x38] sm:$0xff]
    %v1436 = vld [vmem:[#allocation10 + $0x40] sm:$0xff]
    %v1437 = vld [vmem:[#allocation10 + $0x48] sm:$0xff]
    %v1438 = vld [vmem:[#allocation10 + $0x50] sm:$0xff]
    %v1439 = vld [vmem:[#allocation10 + $0x58] sm:$0xff]
    %v1440 = vld [vmem:[#allocation10 + $0x60] sm:$0xff]
    %v1441 = vld [vmem:[#allocation10 + $0x68] sm:$0xff]
    %v1442 = vld [vmem:[#allocation10 + $0x70] sm:$0xff]
    %v1443 = vld [vmem:[#allocation10 + $0x78] sm:$0xff]
    %v1444 = vld [vmem:[%s4] sm:$0x1]
    %v1446 = vlaneseq
    %v1447 = vshrl.u32 %v1446, 7
    %v1448 = vsub.s32 0, %v1447
    %v1449 = vrot.slane %v1444, %v1448
    %1451 = vmatprep.subr.mxu0 0.0
    %1452 = vmatpush1.msra.mxu0 %v1443
    %1453 = vmatprep.subr.mxu0 0.0
    %1454 = vmatpush1.msra.mxu0 %v1442
    %1455 = vmatprep.subr.mxu0 0.0
    %1456 = vmatpush1.msra.mxu0 %v1441
    %1457 = vmatprep.subr.mxu0 0.0
    %1458 = vmatpush1.msra.mxu0 %v1440
    %1459 = vmatprep.subr.mxu0 0.0
    %1460 = vmatpush1.msra.mxu0 %v1439
    %1461 = vmatprep.subr.mxu0 0.0
    %1462 = vmatpush1.msra.mxu0 %v1438
    %1463 = vmatprep.subr.mxu0 0.0
    %1464 = vmatpush1.msra.mxu0 %v1437
    %1465 = vmatprep.subr.mxu0 0.0
    %1466 = vmatpush1.msra.mxu0 %v1436
    %1467 = vmatprep.subr.mxu0 0.0
    %1468 = vmatpush1.msra.mxu0 %v1435
    %1469 = vmatprep.subr.mxu0 0.0
    %1470 = vmatpush1.msra.mxu0 %v1434
    %1471 = vmatprep.subr.mxu0 0.0
    %1472 = vmatpush1.msra.mxu0 %v1433
    %1473 = vmatprep.subr.mxu0 0.0
    %1474 = vmatpush1.msra.mxu0 %v1432
    %1475 = vmatprep.subr.mxu0 0.0
    %1476 = vmatpush1.msra.mxu0 %v1431
    %1477 = vmatprep.subr.mxu0 0.0
    %1478 = vmatpush1.msra.mxu0 %v1430
    %1479 = vmatprep.subr.mxu0 0.0
    %1480 = vmatpush1.msra.mxu0 %v1429
    %1481 = vmatprep.subr.mxu0 0.0
    %1482 = vmatpush1.msra.mxu0 %v1428
    %1483 = vmatprep.subr.mxu0 0.0
    %1484 = vmatpush2.msra.mxu0 0.0
    %1485 = vmatprep.subr.mxu0 0.0
    %1486 = vmatpush2.msra.mxu0 0.0
    %1487 = vmatprep.subr.mxu0 0.0
    %1488 = vmatpush2.msra.mxu0 0.0
    %1489 = vmatprep.subr.mxu0 0.0
    %1490 = vmatpush2.msra.mxu0 0.0
    %1491 = vmatprep.subr.mxu0 0.0
    %1492 = vmatpush2.msra.mxu0 0.0
    %1493 = vmatprep.subr.mxu0 0.0
    %1494 = vmatpush2.msra.mxu0 0.0
    %1495 = vmatprep.subr.mxu0 0.0
    %1496 = vmatpush2.msra.mxu0 0.0
    %1497 = vmatprep.subr.mxu0 0.0
    %1498 = vmatpush2.msra.mxu0 0.0
    %1499 = vmatprep.subr.mxu0 0.0
    %1500 = vmatpush2.msra.mxu0 0.0
    %1501 = vmatprep.subr.mxu0 0.0
    %1502 = vmatpush2.msra.mxu0 0.0
    %1503 = vmatprep.subr.mxu0 0.0
    %1504 = vmatpush2.msra.mxu0 0.0
    %1505 = vmatprep.subr.mxu0 0.0
    %1506 = vmatpush2.msra.mxu0 0.0
    %1507 = vmatprep.subr.mxu0 0.0
    %1508 = vmatpush2.msra.mxu0 0.0
    %1509 = vmatprep.subr.mxu0 0.0
    %1510 = vmatpush2.msra.mxu0 0.0
    %1511 = vmatprep.subr.mxu0 0.0
    %1512 = vmatpush2.msra.mxu0 0.0
    %1513 = vmatprep.subr.mxu0 0.0
    %1514 = vmatpush2.msra.mxu0 0.0
    %1515 = vmatprep.mubr.f32.mxu0 0.0
    %1516 = vmatmul.mubr.f32.gmra.mxu0 %v1427
    %v1517 = vpop.f32.mrf.mxu0
    %v1518 = vadd.f32 %v1449, %v1517
    %v1519 = vpop.f32.mrf.mxu0
    %1520 = vdwg.mxu0
    %v1521 = vxor.u32 %v1518, 2147483648
    %v1522 = vmul.f32 %v1521, 1.442695
    %v1523 = vpow.pop %v1522
    %v1524 = vadd.f32 %v1523, 1.0
    %v1525 = vrcp.pop %v1524
    %v1526 = vmul.f32 1.0, %v1525
    %1527 = vst [vmem:[#allocation11] sm:$0xff] %v1526
    // Predicated region
    $region38: #{tpu_custom_call.1} parent=1 // pred_check
      _
    $region39: #{tpu_custom_call.1} parent=1 // pred_check_branch
      %1529 = sbr.rel (0) target = $region41
    $region40: #{tpu_custom_call.1} parent=1 // pred_region
      %s1531 = ssub.s32 128, 128
      %1532 = vsyncadd [#allocation5], %s1531
      %s1534 = sshll.u32 [#allocation11], 4
      %s1535 = int_to_ptr.vmem [resolvable:$true] %s1534
      %1537 = dma.vmem_to_hbm [thread:$0]  %s1535, 128, %s5, [#allocation5]
    $region41: #{tpu_custom_call.1} parent=1 // pred_fallthru
      _
    // Predicated region
    $region42: #{tpu_custom_call.1} parent=1 // pred_check
      _
    $region43: #{tpu_custom_call.1} parent=1 // pred_check_branch
      %1539 = sbr.rel (0) target = $region45
    $region44: #{tpu_custom_call.1} parent=1 // pred_region
      %1540 = dma.done [#allocation5], 128
    $region45: #{tpu_custom_call.1} parent=1 // pred_fallthru
      _
    %1541 = vsyncpa [#allocation4], 1
    %1542 = vsyncpa [#allocation9], 1
    %1543 = vsyncpa [#allocation5], 1
    %1544 = vsyncpa [#allocation6], 1

</llo_original>
